<compile_context>
chip_gen: v7x
topology: tpu7x:2x2x1
jax: 0.10.0
libtpu: 0.0.40
codegen_flags: <defaults>
</compile_context>

<pallas_src>
import functools
import math

import jax
import jax.numpy as jnp
import numpy as np
from jax import lax
from jax.experimental import pallas as pl
from jax.experimental.pallas import tpu as pltpu


def _project_and_attend(x_ref, wqkv_ref, qkv_scr, *, n_heads, sm_scale):
    """Full-width QKV projection + per-head softmax(Q K^T) V.

    Returns a list of per-head f32 context tiles, each (N, d_v).  Everything
    stays in VMEM / vregs — no HBM traffic inside this helper.
    """
    hd = wqkv_ref.shape[-1]           # H * d_k
    d_k = hd // n_heads
    x = x_ref[...]                    # (N, D), kept in its native dtype

    # Three full-width matmuls (all heads at once): X(N,D) @ W^T(D, H*d_k).
    # f32 accumulation on the MXU; results stored back in the input dtype.
    for i in range(3):
        proj = jnp.dot(x, wqkv_ref[i], preferred_element_type=jnp.float32)
        if i == 0:                    # fold 1/sqrt(d_k) into Q once
            proj = proj * sm_scale
        qkv_scr[i] = proj.astype(qkv_scr.dtype)

    ctxs = []
    for h in range(n_heads):
        sl = slice(h * d_k, (h + 1) * d_k)
        q_h = qkv_scr[0, :, sl]                       # (N, d_k)
        k_h = qkv_scr[1, :, sl]                       # (N, d_k)
        v_h = qkv_scr[2, :, sl]                       # (N, d_v)

        # scores = (Q/sqrt(d_k)) @ K^T   (contract over d_k), f32 accumulate.
        s = lax.dot_general(q_h, k_h, (((1,), (1,)), ((), ())),
                            preferred_element_type=jnp.float32)   # (N, N)
        # Numerically stable softmax along keys (f32 math; divide on the EUP).
        m = jnp.max(s, axis=-1, keepdims=True)
        p = jnp.exp(s - m)
        l = jnp.sum(p, axis=-1, keepdims=True)
        attn = (p * pl.reciprocal(l, approx=True)).astype(v_h.dtype)
        ctxs.append(jnp.dot(attn, v_h, preferred_element_type=jnp.float32))
    return ctxs


def _mha_fused_kernel(x_ref, wqkv_ref, wfct_ref, out_ref, qkv_scr, cjn_scr, *,
                      n_heads, sm_scale):
    """QKV projection + attention + torch transpose/reshape + fc, fully fused."""
    n_q = x_ref.shape[0]
    hd = wqkv_ref.shape[-1]
    d_v = hd // n_heads
    g = hd // n_q                     # wrapper guarantees hd % n_q == 0

    ctxs = _project_and_attend(x_ref, wqkv_ref, qkv_scr,
                               n_heads=n_heads, sm_scale=sm_scale)

    # torch: context.transpose(1, 2) -> (H, d_v, N).  Store each head's
    # transposed context as rows [h*d_v, (h+1)*d_v) of the (H*d_v, N) slab.
    for h, ctx_h in enumerate(ctxs):
        cjn_scr[h * d_v:(h + 1) * d_v, :] = ctx_h.T.astype(cjn_scr.dtype)

    # torch: .reshape(N, H*d_v) @ Wfc.T.  Because hd % n_q == 0, row r of the
    # reshaped matrix is the concat of slab rows {r*g + a : a in [0, g)}, so
    # the reshape folds into g strided-row matmuls — no HBM round trip.
    acc = jnp.zeros(out_ref.shape, jnp.float32)
    for a in range(g):
        rows = cjn_scr[pl.ds(a, n_q, stride=g), :]            # (N, N)
        wblk = wfct_ref[a * n_q:(a + 1) * n_q, :]             # (N, out_dim)
        acc = acc + jnp.dot(rows, wblk, preferred_element_type=jnp.float32)
    out_ref[...] = acc.astype(out_ref.dtype)


def _mha_context_kernel(x_ref, wqkv_ref, ctx_ref, qkv_scr, *, n_heads, sm_scale):
    """Fallback front half: writes the lane-dense (N, H*d_v) context."""
    d_v = wqkv_ref.shape[-1] // n_heads
    ctxs = _project_and_attend(x_ref, wqkv_ref, qkv_scr,
                               n_heads=n_heads, sm_scale=sm_scale)
    for h, ctx_h in enumerate(ctxs):
        ctx_ref[:, h * d_v:(h + 1) * d_v] = ctx_h.astype(ctx_ref.dtype)


def _fc_kernel(c_ref, w_ref, o_ref):
    """One row-tile of: output = fc_input @ Wfc.T (weight pre-transposed)."""
    o_ref[...] = jnp.dot(c_ref[...], w_ref[...],
                         preferred_element_type=jnp.float32).astype(o_ref.dtype)


def multi_head_attention(X, Wq, Wk, Wv, Wfc, n_heads):
    """Pallas-backed equivalent of MultiHeadAttention.forward (PyTorch spec)."""
    N, D = X.shape
    d_k = D // n_heads
    d_v = d_k
    hd = n_heads * d_v                      # fc input width (== D here)
    out_dim = Wfc.shape[0]
    sm_scale = 1.0 / math.sqrt(d_k)
    vmem = pltpu.MemorySpace.VMEM

    # One-time weight layout prep in the wrapper (free XLA ops on small arrays):
    #  * pre-transpose so every in-kernel dot is a plain (M,K)x(K,N) contraction
    #  * stack the Q/K/V weights so they arrive as a single DMA stream
    w_qkv_t = jnp.stack([Wq.T, Wk.T, Wv.T])          # (3, D, H*d_k)
    w_fc_t = Wfc.T                                   # (H*d_v, out_dim)

    cparams = pltpu.CompilerParams(vmem_limit_bytes=32 * 1024 * 1024)

    if hd % N == 0:
        # Fully fused path: one pallas_call, context never leaves VMEM.
        kernel = functools.partial(_mha_fused_kernel,
                                   n_heads=n_heads, sm_scale=sm_scale)
        return pl.pallas_call(
            kernel,
            out_shape=jax.ShapeDtypeStruct((N, out_dim), X.dtype),
            in_specs=[pl.BlockSpec(memory_space=vmem)] * 3,
            out_specs=pl.BlockSpec(memory_space=vmem),
            scratch_shapes=[pltpu.VMEM((3, N, hd), X.dtype),
                            pltpu.VMEM((hd, N), X.dtype)],
            compiler_params=cparams,
        )(X, w_qkv_t, w_fc_t)

    # General-N fallback: the fused projection+attention kernel writes a
    # lane-dense (N, H*d_v) context in the input dtype; the torch
    # transpose/reshape quirk (pure layout plumbing that scrambles tokens into
    # features) is done by XLA; a row-tiled "parallel" fc kernel finishes.
    kernel = functools.partial(_mha_context_kernel,
                               n_heads=n_heads, sm_scale=sm_scale)
    ctx_std = pl.pallas_call(
        kernel,
        out_shape=jax.ShapeDtypeStruct((N, hd), X.dtype),
        in_specs=[pl.BlockSpec(memory_space=vmem)] * 2,
        out_specs=pl.BlockSpec(memory_space=vmem),
        scratch_shapes=[pltpu.VMEM((3, N, hd), X.dtype)],
        compiler_params=cparams,
    )(X, w_qkv_t)

    # torch quirk: context.transpose(1,2).reshape(-1, H*d_v) == ctx_std.T
    # flattened row-major and re-chunked into rows of width H*d_v.
    fc_in = ctx_std.T.reshape(N, hd)

    tile = min(N, 256)
    out = pl.pallas_call(
        _fc_kernel,
        out_shape=jax.ShapeDtypeStruct((N, out_dim), X.dtype),
        grid=(pl.cdiv(N, tile),),
        in_specs=[pl.BlockSpec((tile, hd), lambda i: (i, 0)),
                  pl.BlockSpec((hd, out_dim), lambda i: (0, 0))],   # resident
        out_specs=pl.BlockSpec((tile, out_dim), lambda i: (i, 0)),
        compiler_params=pltpu.CompilerParams(
            dimension_semantics=("parallel",),
            vmem_limit_bytes=32 * 1024 * 1024),
    )(fc_in, w_fc_t)
    return out


def _reference(X, Wq, Wk, Wv, Wfc, n_heads):
    """Pure-JAX replica of the PyTorch forward (same op order, same quirks)."""
    hp = lax.Precision.HIGHEST
    N, D = X.shape
    d_k = D // n_heads
    Q = jnp.dot(X, Wq.T, precision=hp).reshape(N, n_heads, d_k).transpose(1, 0, 2)
    K = jnp.dot(X, Wk.T, precision=hp).reshape(N, n_heads, d_k).transpose(1, 0, 2)
    V = jnp.dot(X, Wv.T, precision=hp).reshape(N, n_heads, d_k).transpose(1, 0, 2)
    scores = jnp.einsum("hqd,hkd->hqk", Q, K, precision=hp) / np.sqrt(d_k)
    attn = jax.nn.softmax(scores, axis=-1)
    context = jnp.einsum("hqk,hkd->hqd", attn, V, precision=hp)     # (H, N, d_v)
    context = jnp.transpose(context, (0, 2, 1)).reshape(N, n_heads * d_k)
    return jnp.dot(context, Wfc.T, precision=hp)


def _run_case(key, N, D, H):
    k1, k2, k3, k4, k5 = jax.random.split(key, 5)
    d_k = D // H
    X = jax.random.normal(k1, (N, D), dtype=jnp.float32)
    Wq = jax.random.normal(k2, (H * d_k, D), dtype=jnp.float32) * 0.1
    Wk = jax.random.normal(k3, (H * d_k, D), dtype=jnp.float32) * 0.1
    Wv = jax.random.normal(k4, (H * d_k, D), dtype=jnp.float32) * 0.1
    Wfc = jax.random.normal(k5, (D, H * d_k), dtype=jnp.float32) * 0.1

    out = multi_head_attention(X, Wq, Wk, Wv, Wfc, H)
    jax.block_until_ready(out)
    ref = _reference(X, Wq, Wk, Wv, Wfc, H)
    # Tolerance covers the approx-reciprocal softmax + MXU f32 accumulation
    # versus the Precision.HIGHEST pure-JAX reference.
    assert np.allclose(np.asarray(out), np.asarray(ref), rtol=2e-3, atol=2e-3), (
        np.max(np.abs(np.asarray(out) - np.asarray(ref))))


if __name__ == "__main__":
    key = jax.random.PRNGKey(0)
    ka, kb = jax.random.split(key)
    # seq=8, input_dim=32, n_heads=4 (d_k=8): fully fused single-kernel path.
    _run_case(ka, N=8, D=32, H=4)
    # seq=12: exercises the general fallback path ((H*d_v) % N != 0) as well.
    _run_case(kb, N=12, D=32, H=4)
    print("KERNEL_OK")
</pallas_src>

<mosaic_0001>
module attributes {stable_mosaic.version = 11 : i64} {
  func.func @_mha_fused_kernel(%arg0: memref<8x32xf32, #tpu.memory_space<vmem>>, %arg1: memref<3x32x32xf32, #tpu.memory_space<vmem>>, %arg2: memref<32x32xf32, #tpu.memory_space<vmem>>, %arg3: memref<8x32xf32, #tpu.memory_space<vmem>>, %arg4: memref<3x8x32xf32, #tpu.memory_space<vmem>>, %arg5: memref<32x8xf32, #tpu.memory_space<vmem>>) attributes {dimension_semantics = [], scalar_prefetch = 0 : i64, scratch_operands = 2 : i64, tpu.core_type = #tpu.core_type<tc>} {
    %c0 = arith.constant 0 : index
    %c0_0 = arith.constant 0 : index
    %0 = vector.load %arg0[%c0, %c0_0] : memref<8x32xf32, #tpu.memory_space<vmem>>, vector<8x32xf32>
    %c0_1 = arith.constant 0 : index
    %c0_2 = arith.constant 0 : index
    %c0_3 = arith.constant 0 : index
    %1 = vector.load %arg1[%c0_1, %c0_2, %c0_3] : memref<3x32x32xf32, #tpu.memory_space<vmem>>, vector<1x32x32xf32>
    %2 = vector.shape_cast %1 : vector<1x32x32xf32> to vector<32x32xf32>
    %cst = arith.constant dense<0.000000e+00> : vector<8x32xf32>
    %3 = tpu.matmul %0, %2, %cst {dimension_numbers = #tpu.dot_dimension_numbers<[1], [0], [0], [1], [0, 0, 1, 1], [], []>} : vector<8x32xf32>, vector<32x32xf32>, vector<8x32xf32> -> vector<8x32xf32>
    %cst_4 = arith.constant 0.353553385 : f32
    %4 = vector.broadcast %cst_4 : f32 to vector<8x32xf32>
    %5 = arith.mulf %3, %4 : vector<8x32xf32>
    %c0_5 = arith.constant 0 : index
    %c0_6 = arith.constant 0 : index
    %c0_7 = arith.constant 0 : index
    %6 = vector.load %arg4[%c0_5, %c0_6, %c0_7] : memref<3x8x32xf32, #tpu.memory_space<vmem>>, vector<1x8x32xf32>
    %7 = vector.shape_cast %6 : vector<1x8x32xf32> to vector<8x32xf32>
    %8 = vector.shape_cast %5 : vector<8x32xf32> to vector<1x8x32xf32>
    tpu.vector_store %arg4[%c0_5, %c0_6, %c0_7], %8 {strides = array<i32>} : memref<3x8x32xf32, #tpu.memory_space<vmem>>, vector<1x8x32xf32>,
    %c1 = arith.constant 1 : index
    %c0_8 = arith.constant 0 : index
    %c0_9 = arith.constant 0 : index
    %9 = vector.load %arg1[%c1, %c0_8, %c0_9] : memref<3x32x32xf32, #tpu.memory_space<vmem>>, vector<1x32x32xf32>
    %10 = vector.shape_cast %9 : vector<1x32x32xf32> to vector<32x32xf32>
    %cst_10 = arith.constant dense<0.000000e+00> : vector<8x32xf32>
    %11 = tpu.matmul %0, %10, %cst_10 {dimension_numbers = #tpu.dot_dimension_numbers<[1], [0], [0], [1], [0, 0, 1, 1], [], []>} : vector<8x32xf32>, vector<32x32xf32>, vector<8x32xf32> -> vector<8x32xf32>
    %c1_11 = arith.constant 1 : index
    %c0_12 = arith.constant 0 : index
    %c0_13 = arith.constant 0 : index
    %12 = vector.load %arg4[%c1_11, %c0_12, %c0_13] : memref<3x8x32xf32, #tpu.memory_space<vmem>>, vector<1x8x32xf32>
    %13 = vector.shape_cast %12 : vector<1x8x32xf32> to vector<8x32xf32>
    %14 = vector.shape_cast %11 : vector<8x32xf32> to vector<1x8x32xf32>
    tpu.vector_store %arg4[%c1_11, %c0_12, %c0_13], %14 {strides = array<i32>} : memref<3x8x32xf32, #tpu.memory_space<vmem>>, vector<1x8x32xf32>,
    %c2 = arith.constant 2 : index
    %c0_14 = arith.constant 0 : index
    %c0_15 = arith.constant 0 : index
    %15 = vector.load %arg1[%c2, %c0_14, %c0_15] : memref<3x32x32xf32, #tpu.memory_space<vmem>>, vector<1x32x32xf32>
    %16 = vector.shape_cast %15 : vector<1x32x32xf32> to vector<32x32xf32>
    %cst_16 = arith.constant dense<0.000000e+00> : vector<8x32xf32>
    %17 = tpu.matmul %0, %16, %cst_16 {dimension_numbers = #tpu.dot_dimension_numbers<[1], [0], [0], [1], [0, 0, 1, 1], [], []>} : vector<8x32xf32>, vector<32x32xf32>, vector<8x32xf32> -> vector<8x32xf32>
    %c2_17 = arith.constant 2 : index
    %c0_18 = arith.constant 0 : index
    %c0_19 = arith.constant 0 : index
    %18 = vector.load %arg4[%c2_17, %c0_18, %c0_19] : memref<3x8x32xf32, #tpu.memory_space<vmem>>, vector<1x8x32xf32>
    %19 = vector.shape_cast %18 : vector<1x8x32xf32> to vector<8x32xf32>
    %20 = vector.shape_cast %17 : vector<8x32xf32> to vector<1x8x32xf32>
    tpu.vector_store %arg4[%c2_17, %c0_18, %c0_19], %20 {strides = array<i32>} : memref<3x8x32xf32, #tpu.memory_space<vmem>>, vector<1x8x32xf32>,
    %c0_20 = arith.constant 0 : index
    %c0_21 = arith.constant 0 : index
    %c0_22 = arith.constant 0 : index
    %21 = vector.load %arg4[%c0_20, %c0_21, %c0_22] : memref<3x8x32xf32, #tpu.memory_space<vmem>>, vector<1x8x8xf32>
    %22 = vector.shape_cast %21 : vector<1x8x8xf32> to vector<8x8xf32>
    %c1_23 = arith.constant 1 : index
    %c0_24 = arith.constant 0 : index
    %c0_25 = arith.constant 0 : index
    %23 = vector.load %arg4[%c1_23, %c0_24, %c0_25] : memref<3x8x32xf32, #tpu.memory_space<vmem>>, vector<1x8x8xf32>
    %24 = vector.shape_cast %23 : vector<1x8x8xf32> to vector<8x8xf32>
    %c2_26 = arith.constant 2 : index
    %c0_27 = arith.constant 0 : index
    %c0_28 = arith.constant 0 : index
    %25 = vector.load %arg4[%c2_26, %c0_27, %c0_28] : memref<3x8x32xf32, #tpu.memory_space<vmem>>, vector<1x8x8xf32>
    %26 = vector.shape_cast %25 : vector<1x8x8xf32> to vector<8x8xf32>
    %cst_29 = arith.constant dense<0.000000e+00> : vector<8x8xf32>
    %27 = tpu.matmul %22, %24, %cst_29 {dimension_numbers = #tpu.dot_dimension_numbers<[1], [1], [0], [0], [0, 0, 1, 0], [], []>} : vector<8x8xf32>, vector<8x8xf32>, vector<8x8xf32> -> vector<8x8xf32>
    %cst_30 = arith.constant dense<0xFF800000> : vector<8xf32>
    %28 = vector.multi_reduction <maximumf>, %27, %cst_30 [1] : vector<8x8xf32> to vector<8xf32>
    %29 = vector.shape_cast %28 : vector<8xf32> to vector<8x1xf32>
    %30 = vector.broadcast %29 : vector<8x1xf32> to vector<8x8xf32>
    %31 = arith.subf %27, %30 : vector<8x8xf32>
    %32 = math.exp %31 : vector<8x8xf32>
    %cst_31 = arith.constant dense<0.000000e+00> : vector<8xf32>
    %33 = vector.multi_reduction <add>, %32, %cst_31 [1] : vector<8x8xf32> to vector<8xf32>
    %34 = vector.shape_cast %33 : vector<8xf32> to vector<8x1xf32>
    %35 = tpu.reciprocal %34 {approx = true} : vector<8x1xf32> -> vector<8x1xf32>
    %36 = vector.broadcast %35 : vector<8x1xf32> to vector<8x8xf32>
    %37 = arith.mulf %32, %36 : vector<8x8xf32>
    %cst_32 = arith.constant dense<0.000000e+00> : vector<8x8xf32>
    %38 = tpu.matmul %37, %26, %cst_32 {dimension_numbers = #tpu.dot_dimension_numbers<[1], [0], [0], [1], [0, 0, 1, 1], [], []>} : vector<8x8xf32>, vector<8x8xf32>, vector<8x8xf32> -> vector<8x8xf32>
    %c0_33 = arith.constant 0 : index
    %c0_34 = arith.constant 0 : index
    %c8 = arith.constant 8 : index
    %39 = vector.load %arg4[%c0_33, %c0_34, %c8] : memref<3x8x32xf32, #tpu.memory_space<vmem>>, vector<1x8x8xf32>
    %40 = vector.shape_cast %39 : vector<1x8x8xf32> to vector<8x8xf32>
    %c1_35 = arith.constant 1 : index
    %c0_36 = arith.constant 0 : index
    %c8_37 = arith.constant 8 : index
    %41 = vector.load %arg4[%c1_35, %c0_36, %c8_37] : memref<3x8x32xf32, #tpu.memory_space<vmem>>, vector<1x8x8xf32>
    %42 = vector.shape_cast %41 : vector<1x8x8xf32> to vector<8x8xf32>
    %c2_38 = arith.constant 2 : index
    %c0_39 = arith.constant 0 : index
    %c8_40 = arith.constant 8 : index
    %43 = vector.load %arg4[%c2_38, %c0_39, %c8_40] : memref<3x8x32xf32, #tpu.memory_space<vmem>>, vector<1x8x8xf32>
    %44 = vector.shape_cast %43 : vector<1x8x8xf32> to vector<8x8xf32>
    %cst_41 = arith.constant dense<0.000000e+00> : vector<8x8xf32>
    %45 = tpu.matmul %40, %42, %cst_41 {dimension_numbers = #tpu.dot_dimension_numbers<[1], [1], [0], [0], [0, 0, 1, 0], [], []>} : vector<8x8xf32>, vector<8x8xf32>, vector<8x8xf32> -> vector<8x8xf32>
    %cst_42 = arith.constant dense<0xFF800000> : vector<8xf32>
    %46 = vector.multi_reduction <maximumf>, %45, %cst_42 [1] : vector<8x8xf32> to vector<8xf32>
    %47 = vector.shape_cast %46 : vector<8xf32> to vector<8x1xf32>
    %48 = vector.broadcast %47 : vector<8x1xf32> to vector<8x8xf32>
    %49 = arith.subf %45, %48 : vector<8x8xf32>
    %50 = math.exp %49 : vector<8x8xf32>
    %cst_43 = arith.constant dense<0.000000e+00> : vector<8xf32>
    %51 = vector.multi_reduction <add>, %50, %cst_43 [1] : vector<8x8xf32> to vector<8xf32>
    %52 = vector.shape_cast %51 : vector<8xf32> to vector<8x1xf32>
    %53 = tpu.reciprocal %52 {approx = true} : vector<8x1xf32> -> vector<8x1xf32>
    %54 = vector.broadcast %53 : vector<8x1xf32> to vector<8x8xf32>
    %55 = arith.mulf %50, %54 : vector<8x8xf32>
    %cst_44 = arith.constant dense<0.000000e+00> : vector<8x8xf32>
    %56 = tpu.matmul %55, %44, %cst_44 {dimension_numbers = #tpu.dot_dimension_numbers<[1], [0], [0], [1], [0, 0, 1, 1], [], []>} : vector<8x8xf32>, vector<8x8xf32>, vector<8x8xf32> -> vector<8x8xf32>
    %c0_45 = arith.constant 0 : index
    %c0_46 = arith.constant 0 : index
    %c16 = arith.constant 16 : index
    %57 = vector.load %arg4[%c0_45, %c0_46, %c16] : memref<3x8x32xf32, #tpu.memory_space<vmem>>, vector<1x8x8xf32>
    %58 = vector.shape_cast %57 : vector<1x8x8xf32> to vector<8x8xf32>
    %c1_47 = arith.constant 1 : index
    %c0_48 = arith.constant 0 : index
    %c16_49 = arith.constant 16 : index
    %59 = vector.load %arg4[%c1_47, %c0_48, %c16_49] : memref<3x8x32xf32, #tpu.memory_space<vmem>>, vector<1x8x8xf32>
    %60 = vector.shape_cast %59 : vector<1x8x8xf32> to vector<8x8xf32>
    %c2_50 = arith.constant 2 : index
    %c0_51 = arith.constant 0 : index
    %c16_52 = arith.constant 16 : index
    %61 = vector.load %arg4[%c2_50, %c0_51, %c16_52] : memref<3x8x32xf32, #tpu.memory_space<vmem>>, vector<1x8x8xf32>
    %62 = vector.shape_cast %61 : vector<1x8x8xf32> to vector<8x8xf32>
    %cst_53 = arith.constant dense<0.000000e+00> : vector<8x8xf32>
    %63 = tpu.matmul %58, %60, %cst_53 {dimension_numbers = #tpu.dot_dimension_numbers<[1], [1], [0], [0], [0, 0, 1, 0], [], []>} : vector<8x8xf32>, vector<8x8xf32>, vector<8x8xf32> -> vector<8x8xf32>
    %cst_54 = arith.constant dense<0xFF800000> : vector<8xf32>
    %64 = vector.multi_reduction <maximumf>, %63, %cst_54 [1] : vector<8x8xf32> to vector<8xf32>
    %65 = vector.shape_cast %64 : vector<8xf32> to vector<8x1xf32>
    %66 = vector.broadcast %65 : vector<8x1xf32> to vector<8x8xf32>
    %67 = arith.subf %63, %66 : vector<8x8xf32>
    %68 = math.exp %67 : vector<8x8xf32>
    %cst_55 = arith.constant dense<0.000000e+00> : vector<8xf32>
    %69 = vector.multi_reduction <add>, %68, %cst_55 [1] : vector<8x8xf32> to vector<8xf32>
    %70 = vector.shape_cast %69 : vector<8xf32> to vector<8x1xf32>
    %71 = tpu.reciprocal %70 {approx = true} : vector<8x1xf32> -> vector<8x1xf32>
    %72 = vector.broadcast %71 : vector<8x1xf32> to vector<8x8xf32>
    %73 = arith.mulf %68, %72 : vector<8x8xf32>
    %cst_56 = arith.constant dense<0.000000e+00> : vector<8x8xf32>
    %74 = tpu.matmul %73, %62, %cst_56 {dimension_numbers = #tpu.dot_dimension_numbers<[1], [0], [0], [1], [0, 0, 1, 1], [], []>} : vector<8x8xf32>, vector<8x8xf32>, vector<8x8xf32> -> vector<8x8xf32>
    %c0_57 = arith.constant 0 : index
    %c0_58 = arith.constant 0 : index
    %c24 = arith.constant 24 : index
    %75 = vector.load %arg4[%c0_57, %c0_58, %c24] : memref<3x8x32xf32, #tpu.memory_space<vmem>>, vector<1x8x8xf32>
    %76 = vector.shape_cast %75 : vector<1x8x8xf32> to vector<8x8xf32>
    %c1_59 = arith.constant 1 : index
    %c0_60 = arith.constant 0 : index
    %c24_61 = arith.constant 24 : index
    %77 = vector.load %arg4[%c1_59, %c0_60, %c24_61] : memref<3x8x32xf32, #tpu.memory_space<vmem>>, vector<1x8x8xf32>
    %78 = vector.shape_cast %77 : vector<1x8x8xf32> to vector<8x8xf32>
    %c2_62 = arith.constant 2 : index
    %c0_63 = arith.constant 0 : index
    %c24_64 = arith.constant 24 : index
    %79 = vector.load %arg4[%c2_62, %c0_63, %c24_64] : memref<3x8x32xf32, #tpu.memory_space<vmem>>, vector<1x8x8xf32>
    %80 = vector.shape_cast %79 : vector<1x8x8xf32> to vector<8x8xf32>
    %cst_65 = arith.constant dense<0.000000e+00> : vector<8x8xf32>
    %81 = tpu.matmul %76, %78, %cst_65 {dimension_numbers = #tpu.dot_dimension_numbers<[1], [1], [0], [0], [0, 0, 1, 0], [], []>} : vector<8x8xf32>, vector<8x8xf32>, vector<8x8xf32> -> vector<8x8xf32>
    %cst_66 = arith.constant dense<0xFF800000> : vector<8xf32>
    %82 = vector.multi_reduction <maximumf>, %81, %cst_66 [1] : vector<8x8xf32> to vector<8xf32>
    %83 = vector.shape_cast %82 : vector<8xf32> to vector<8x1xf32>
    %84 = vector.broadcast %83 : vector<8x1xf32> to vector<8x8xf32>
    %85 = arith.subf %81, %84 : vector<8x8xf32>
    %86 = math.exp %85 : vector<8x8xf32>
    %cst_67 = arith.constant dense<0.000000e+00> : vector<8xf32>
    %87 = vector.multi_reduction <add>, %86, %cst_67 [1] : vector<8x8xf32> to vector<8xf32>
    %88 = vector.shape_cast %87 : vector<8xf32> to vector<8x1xf32>
    %89 = tpu.reciprocal %88 {approx = true} : vector<8x1xf32> -> vector<8x1xf32>
    %90 = vector.broadcast %89 : vector<8x1xf32> to vector<8x8xf32>
    %91 = arith.mulf %86, %90 : vector<8x8xf32>
    %cst_68 = arith.constant dense<0.000000e+00> : vector<8x8xf32>
    %92 = tpu.matmul %91, %80, %cst_68 {dimension_numbers = #tpu.dot_dimension_numbers<[1], [0], [0], [1], [0, 0, 1, 1], [], []>} : vector<8x8xf32>, vector<8x8xf32>, vector<8x8xf32> -> vector<8x8xf32>
    %93 = tpu.transpose %38, [1, 0] : vector<8x8xf32> -> vector<8x8xf32>
    %c0_69 = arith.constant 0 : index
    %c0_70 = arith.constant 0 : index
    %94 = vector.load %arg5[%c0_69, %c0_70] : memref<32x8xf32, #tpu.memory_space<vmem>>, vector<8x8xf32>
    tpu.vector_store %arg5[%c0_69, %c0_70], %93 {strides = array<i32>} : memref<32x8xf32, #tpu.memory_space<vmem>>, vector<8x8xf32>,
    %95 = tpu.transpose %56, [1, 0] : vector<8x8xf32> -> vector<8x8xf32>
    %c8_71 = arith.constant 8 : index
    %c0_72 = arith.constant 0 : index
    %96 = vector.load %arg5[%c8_71, %c0_72] : memref<32x8xf32, #tpu.memory_space<vmem>>, vector<8x8xf32>
    tpu.vector_store %arg5[%c8_71, %c0_72], %95 {strides = array<i32>} : memref<32x8xf32, #tpu.memory_space<vmem>>, vector<8x8xf32>,
    %97 = tpu.transpose %74, [1, 0] : vector<8x8xf32> -> vector<8x8xf32>
    %c16_73 = arith.constant 16 : index
    %c0_74 = arith.constant 0 : index
    %98 = vector.load %arg5[%c16_73, %c0_74] : memref<32x8xf32, #tpu.memory_space<vmem>>, vector<8x8xf32>
    tpu.vector_store %arg5[%c16_73, %c0_74], %97 {strides = array<i32>} : memref<32x8xf32, #tpu.memory_space<vmem>>, vector<8x8xf32>,
    %99 = tpu.transpose %92, [1, 0] : vector<8x8xf32> -> vector<8x8xf32>
    %c24_75 = arith.constant 24 : index
    %c0_76 = arith.constant 0 : index
    %100 = vector.load %arg5[%c24_75, %c0_76] : memref<32x8xf32, #tpu.memory_space<vmem>>, vector<8x8xf32>
    tpu.vector_store %arg5[%c24_75, %c0_76], %99 {strides = array<i32>} : memref<32x8xf32, #tpu.memory_space<vmem>>, vector<8x8xf32>,
    %cst_77 = arith.constant 0.000000e+00 : f32
    %101 = vector.broadcast %cst_77 : f32 to vector<8x32xf32>
    %c0_78 = arith.constant 0 : index
    %c0_79 = arith.constant 0 : index
    %102 = tpu.strided_load %arg5[%c0_78, %c0_79] {strides = array<i32: 4, 1>} : memref<32x8xf32, #tpu.memory_space<vmem>>, vector<8x8xf32>
    %c0_80 = arith.constant 0 : index
    %c0_81 = arith.constant 0 : index
    %103 = vector.load %arg2[%c0_80, %c0_81] : memref<32x32xf32, #tpu.memory_space<vmem>>, vector<8x32xf32>
    %cst_82 = arith.constant dense<0.000000e+00> : vector<8x32xf32>
    %104 = tpu.matmul %102, %103, %cst_82 {dimension_numbers = #tpu.dot_dimension_numbers<[1], [0], [0], [1], [0, 0, 1, 1], [], []>} : vector<8x8xf32>, vector<8x32xf32>, vector<8x32xf32> -> vector<8x32xf32>
    %105 = arith.addf %101, %104 : vector<8x32xf32>
    %c1_83 = arith.constant 1 : index
    %c0_84 = arith.constant 0 : index
    %106 = tpu.strided_load %arg5[%c1_83, %c0_84] {strides = array<i32: 4, 1>} : memref<32x8xf32, #tpu.memory_space<vmem>>, vector<8x8xf32>
    %c8_85 = arith.constant 8 : index
    %c0_86 = arith.constant 0 : index
    %107 = vector.load %arg2[%c8_85, %c0_86] : memref<32x32xf32, #tpu.memory_space<vmem>>, vector<8x32xf32>
    %cst_87 = arith.constant dense<0.000000e+00> : vector<8x32xf32>
    %108 = tpu.matmul %106, %107, %cst_87 {dimension_numbers = #tpu.dot_dimension_numbers<[1], [0], [0], [1], [0, 0, 1, 1], [], []>} : vector<8x8xf32>, vector<8x32xf32>, vector<8x32xf32> -> vector<8x32xf32>
    %109 = arith.addf %105, %108 : vector<8x32xf32>
    %c2_88 = arith.constant 2 : index
    %c0_89 = arith.constant 0 : index
    %110 = tpu.strided_load %arg5[%c2_88, %c0_89] {strides = array<i32: 4, 1>} : memref<32x8xf32, #tpu.memory_space<vmem>>, vector<8x8xf32>
    %c16_90 = arith.constant 16 : index
    %c0_91 = arith.constant 0 : index
    %111 = vector.load %arg2[%c16_90, %c0_91] : memref<32x32xf32, #tpu.memory_space<vmem>>, vector<8x32xf32>
    %cst_92 = arith.constant dense<0.000000e+00> : vector<8x32xf32>
    %112 = tpu.matmul %110, %111, %cst_92 {dimension_numbers = #tpu.dot_dimension_numbers<[1], [0], [0], [1], [0, 0, 1, 1], [], []>} : vector<8x8xf32>, vector<8x32xf32>, vector<8x32xf32> -> vector<8x32xf32>
    %113 = arith.addf %109, %112 : vector<8x32xf32>
    %c3 = arith.constant 3 : index
    %c0_93 = arith.constant 0 : index
    %114 = tpu.strided_load %arg5[%c3, %c0_93] {strides = array<i32: 4, 1>} : memref<32x8xf32, #tpu.memory_space<vmem>>, vector<8x8xf32>
    %c24_94 = arith.constant 24 : index
    %c0_95 = arith.constant 0 : index
    %115 = vector.load %arg2[%c24_94, %c0_95] : memref<32x32xf32, #tpu.memory_space<vmem>>, vector<8x32xf32>
    %cst_96 = arith.constant dense<0.000000e+00> : vector<8x32xf32>
    %116 = tpu.matmul %114, %115, %cst_96 {dimension_numbers = #tpu.dot_dimension_numbers<[1], [0], [0], [1], [0, 0, 1, 1], [], []>} : vector<8x8xf32>, vector<8x32xf32>, vector<8x32xf32> -> vector<8x32xf32>
    %117 = arith.addf %113, %116 : vector<8x32xf32>
    %c0_97 = arith.constant 0 : index
    %c0_98 = arith.constant 0 : index
    %118 = vector.load %arg3[%c0_97, %c0_98] : memref<8x32xf32, #tpu.memory_space<vmem>>, vector<8x32xf32>
    tpu.vector_store %arg3[%c0_97, %c0_98], %117 {strides = array<i32>} : memref<8x32xf32, #tpu.memory_space<vmem>>, vector<8x32xf32>,
    return
  }
}

</mosaic_0001>

<llo_original>
// kernel: tpu_custom_call.1
$region0: #{tpu_custom_call.1}
  #allocation0 [shape = 'u32[]', space=smem, size = 0x4, offset = 0x4, fixed_abs, tag = 'smem constant byte address 0x4 - core index']
  #allocation1 [shape = 'u32[144,128]{1,0:T(1,128)}', space=vmem, size = 0x12000, scoped, tag = 'internal scratch']
  #allocation2 [shape = 'f32[3,8,32]{2,1,0:T(8,128)}', space=vmem, size = 0x3000, scoped, tag = 'scratch operand']
  #allocation3 [shape = 'f32[32,8]{1,0:T(8,128)}', space=vmem, size = 0x4000, scoped, tag = 'scratch operand']
  %s0 = inlined_call_operand.hbm [shape: f32[8,32], index: 0, kind: input, shape index: {}]
  %s1 = inlined_call_operand.hbm [shape: f32[3,32,32], index: 1, kind: input, shape index: {}]
  %s2 = inlined_call_operand.hbm [shape: f32[32,32], index: 2, kind: input, shape index: {}]
  %s3 = inlined_call_operand.hbm [shape: f32[8,32], index: 3, kind: output, shape index: {}]
  %s4 = sld [smem:[#allocation0]]
  $region34: #{tpu_custom_call.1} parent=0
    _
  %s6 = ssub.s32 1, %s4
  %s7 = scalar_select 0, %s6, %s4
  $region1: #{tpu_custom_call.1} parent=0
    #allocation4 [shape = 'u8[4096]{0}', space=vmem, size = 0x1000, scoped, tag = 'input window, operand 0, single buffered']
    #allocation5 [shape = 's32[1]{0}', space=sflag, size = 0x4, scoped, tag = 'scoped memory for tpu_custom_call.1']
    #allocation6 [shape = 's32[1]{0}', space=sflag, size = 0x4, scoped, tag = 'scoped memory for tpu_custom_call.1']
    #allocation7 [shape = 'u8[49152]{0}', space=vmem, size = 0xc000, scoped, tag = 'input window, operand 1, single buffered']
    #allocation8 [shape = 's32[1]{0}', space=sflag, size = 0x4, scoped, tag = 'scoped memory for tpu_custom_call.1']
    #allocation9 [shape = 'u8[16384]{0}', space=vmem, size = 0x4000, scoped, tag = 'input window, operand 2, single buffered']
    #allocation10 [shape = 'u8[4096]{0}', space=vmem, size = 0x1000, scoped, tag = 'output window, operand 0, single buffered']
    %8 = vsyncpa [#allocation5], 0
    %9 = vsyncpa [#allocation8], 0
    %10 = vsyncpa [#allocation6], 0
    // Predicated region
    $region2: #{tpu_custom_call.1} parent=1 // pred_check
      _
    $region3: #{tpu_custom_call.1} parent=1 // pred_check_branch
      %12 = sbr.rel (0) target = $region5
    $region4: #{tpu_custom_call.1} parent=1 // pred_region
      %s14 = ssub.s32 128, 128
      %15 = vsyncadd [#allocation5], %s14
      %s17 = sshll.u32 [#allocation4], 4
      %s18 = int_to_ptr.vmem [resolvable:$true] %s17
      %20 = dma.hbm_to_vmem [thread:$0]  %s0, 128, %s18, [#allocation5]
    $region5: #{tpu_custom_call.1} parent=1 // pred_fallthru
      _
    // Predicated region
    $region6: #{tpu_custom_call.1} parent=1 // pred_check
      _
    $region7: #{tpu_custom_call.1} parent=1 // pred_check_branch
      %22 = sbr.rel (0) target = $region9
    $region8: #{tpu_custom_call.1} parent=1 // pred_region
      %s24 = ssub.s32 1536, 1536
      %25 = vsyncadd [#allocation8], %s24
      %s26 = sshll.u32 [#allocation7], 4
      %s27 = int_to_ptr.vmem [resolvable:$true] %s26
      %32 = dma.hbm_to_vmem [thread:$0]  %s1, 1536, %s27, [#allocation8], 128, 128, 8
    $region9: #{tpu_custom_call.1} parent=1 // pred_fallthru
      _
    // Predicated region
    $region10: #{tpu_custom_call.1} parent=1 // pred_check
      _
    $region11: #{tpu_custom_call.1} parent=1 // pred_check_branch
      %34 = sbr.rel (0) target = $region13
    $region12: #{tpu_custom_call.1} parent=1 // pred_region
      %s36 = ssub.s32 512, 512
      %37 = vsyncadd [#allocation8], %s36
      %s38 = sshll.u32 [#allocation9], 4
      %s39 = int_to_ptr.vmem [resolvable:$true] %s38
      %44 = dma.hbm_to_vmem [thread:$0]  %s2, 512, %s39, [#allocation8], 128, 128, 8
    $region13: #{tpu_custom_call.1} parent=1 // pred_fallthru
      _
    // Predicated region
    $region14: #{tpu_custom_call.1} parent=1 // pred_check
      _
    $region15: #{tpu_custom_call.1} parent=1 // pred_check_branch
      %46 = sbr.rel (0) target = $region17
    $region16: #{tpu_custom_call.1} parent=1 // pred_region
      %47 = dma.done [#allocation5], 128
    $region17: #{tpu_custom_call.1} parent=1 // pred_fallthru
      _
    // Predicated region
    $region18: #{tpu_custom_call.1} parent=1 // pred_check
      _
    $region19: #{tpu_custom_call.1} parent=1 // pred_check_branch
      %49 = sbr.rel (0) target = $region21
    $region20: #{tpu_custom_call.1} parent=1 // pred_region
      %50 = dma.done [#allocation8], 1536
    $region21: #{tpu_custom_call.1} parent=1 // pred_fallthru
      _
    // Predicated region
    $region22: #{tpu_custom_call.1} parent=1 // pred_check
      _
    $region23: #{tpu_custom_call.1} parent=1 // pred_check_branch
      %52 = sbr.rel (0) target = $region25
    $region24: #{tpu_custom_call.1} parent=1 // pred_region
      %53 = dma.done [#allocation8], 512
    $region25: #{tpu_custom_call.1} parent=1 // pred_fallthru
      _
    %v54 = vld [vmem:[#allocation4] sm:$0xff]
    %v55 = vld [vmem:[#allocation7] sm:$0xff]
    %v56 = vld [vmem:[#allocation7 + $0x8] sm:$0xff]
    %v57 = vld [vmem:[#allocation7 + $0x10] sm:$0xff]
    %v58 = vld [vmem:[#allocation7 + $0x18] sm:$0xff]
    %vm59 = vcmask 261120
    %v61 = vsel %vm59, %v54, 0
    %63 = vmatprep.subr.mxu0 0.0
    %64 = vmatpush1.msra.mxu0 %v55
    %65 = vmatprep.subr.mxu0 0.0
    %66 = vmatpush1.msra.mxu0 %v56
    %67 = vmatprep.subr.mxu0 0.0
    %68 = vmatpush1.msra.mxu0 %v57
    %69 = vmatprep.subr.mxu0 0.0
    %70 = vmatpush1.msra.mxu0 %v58
    %71 = vmatprep.subr.mxu0 0.0
    %72 = vmatpush1.msra.mxu0 0.0
    %73 = vmatprep.subr.mxu0 0.0
    %74 = vmatpush1.msra.mxu0 0.0
    %75 = vmatprep.subr.mxu0 0.0
    %76 = vmatpush1.msra.mxu0 0.0
    %77 = vmatprep.subr.mxu0 0.0
    %78 = vmatpush1.msra.mxu0 0.0
    %79 = vmatprep.subr.mxu0 0.0
    %80 = vmatpush1.msra.mxu0 0.0
    %81 = vmatprep.subr.mxu0 0.0
    %82 = vmatpush1.msra.mxu0 0.0
    %83 = vmatprep.subr.mxu0 0.0
    %84 = vmatpush1.msra.mxu0 0.0
    %85 = vmatprep.subr.mxu0 0.0
    %86 = vmatpush1.msra.mxu0 0.0
    %87 = vmatprep.subr.mxu0 0.0
    %88 = vmatpush1.msra.mxu0 0.0
    %89 = vmatprep.subr.mxu0 0.0
    %90 = vmatpush1.msra.mxu0 0.0
    %91 = vmatprep.subr.mxu0 0.0
    %92 = vmatpush1.msra.mxu0 0.0
    %93 = vmatprep.subr.mxu0 0.0
    %94 = vmatpush1.msra.mxu0 0.0
    %95 = vmatprep.subr.mxu0 0.0
    %96 = vmatpush1.msra.mxu0 0.0
    %97 = vmatprep.subr.mxu0 0.0
    %98 = vmatpush1.msra.mxu0 0.0
    %99 = vmatprep.subr.mxu0 0.0
    %100 = vmatpush1.msra.mxu0 0.0
    %101 = vmatprep.subr.mxu0 0.0
    %102 = vmatpush1.msra.mxu0 0.0
    %103 = vmatprep.subr.mxu0 0.0
    %104 = vmatpush1.msra.mxu0 0.0
    %105 = vmatprep.subr.mxu0 0.0
    %106 = vmatpush1.msra.mxu0 0.0
    %107 = vmatprep.subr.mxu0 0.0
    %108 = vmatpush1.msra.mxu0 0.0
    %109 = vmatprep.subr.mxu0 0.0
    %110 = vmatpush1.msra.mxu0 0.0
    %111 = vmatprep.subr.mxu0 0.0
    %112 = vmatpush1.msra.mxu0 0.0
    %113 = vmatprep.subr.mxu0 0.0
    %114 = vmatpush1.msra.mxu0 0.0
    %115 = vmatprep.subr.mxu0 0.0
    %116 = vmatpush1.msra.mxu0 0.0
    %117 = vmatprep.subr.mxu0 0.0
    %118 = vmatpush1.msra.mxu0 0.0
    %119 = vmatprep.subr.mxu0 0.0
    %120 = vmatpush1.msra.mxu0 0.0
    %121 = vmatprep.subr.mxu0 0.0
    %122 = vmatpush1.msra.mxu0 0.0
    %123 = vmatprep.subr.mxu0 0.0
    %124 = vmatpush1.msra.mxu0 0.0
    %125 = vmatprep.subr.mxu0 0.0
    %126 = vmatpush1.msra.mxu0 0.0
    %127 = vmatprep.mubr.f32.mxu0 0.0
    %128 = vmatmul.mubr.f32.gmra.mrb[0].mxu0 %v61
    %v129 = vpop.f32.mrb[0].mxu0
    %v130 = vadd.f32 0.0, %v129
    %v131 = vpop.f32.mrb[0].mxu0
    %132 = vdwg.mxu0
    %v133 = vmul.f32 %v130, 0.35355338
    %134 = vst.msk [vmem:[#allocation2] sm:$0xff] %vm59, %v133
    %s135 = scalar_lea.vmem [#allocation7], 32
    %v136 = vld [vmem:[%s135] sm:$0xff]
    %v137 = vld [vmem:[%s135 + $0x8] sm:$0xff]
    %v138 = vld [vmem:[%s135 + $0x10] sm:$0xff]
    %v139 = vld [vmem:[%s135 + $0x18] sm:$0xff]
    %140 = vmatprep.subr.mxu0 0.0
    %141 = vmatpush1.msra.mxu0 %v136
    %142 = vmatprep.subr.mxu0 0.0
    %143 = vmatpush1.msra.mxu0 %v137
    %144 = vmatprep.subr.mxu0 0.0
    %145 = vmatpush1.msra.mxu0 %v138
    %146 = vmatprep.subr.mxu0 0.0
    %147 = vmatpush1.msra.mxu0 %v139
    %148 = vmatprep.subr.mxu0 0.0
    %149 = vmatpush1.msra.mxu0 0.0
    %150 = vmatprep.subr.mxu0 0.0
    %151 = vmatpush1.msra.mxu0 0.0
    %152 = vmatprep.subr.mxu0 0.0
    %153 = vmatpush1.msra.mxu0 0.0
    %154 = vmatprep.subr.mxu0 0.0
    %155 = vmatpush1.msra.mxu0 0.0
    %156 = vmatprep.subr.mxu0 0.0
    %157 = vmatpush1.msra.mxu0 0.0
    %158 = vmatprep.subr.mxu0 0.0
    %159 = vmatpush1.msra.mxu0 0.0
    %160 = vmatprep.subr.mxu0 0.0
    %161 = vmatpush1.msra.mxu0 0.0
    %162 = vmatprep.subr.mxu0 0.0
    %163 = vmatpush1.msra.mxu0 0.0
    %164 = vmatprep.subr.mxu0 0.0
    %165 = vmatpush1.msra.mxu0 0.0
    %166 = vmatprep.subr.mxu0 0.0
    %167 = vmatpush1.msra.mxu0 0.0
    %168 = vmatprep.subr.mxu0 0.0
    %169 = vmatpush1.msra.mxu0 0.0
    %170 = vmatprep.subr.mxu0 0.0
    %171 = vmatpush1.msra.mxu0 0.0
    %172 = vmatprep.subr.mxu0 0.0
    %173 = vmatpush1.msra.mxu0 0.0
    %174 = vmatprep.subr.mxu0 0.0
    %175 = vmatpush1.msra.mxu0 0.0
    %176 = vmatprep.subr.mxu0 0.0
    %177 = vmatpush1.msra.mxu0 0.0
    %178 = vmatprep.subr.mxu0 0.0
    %179 = vmatpush1.msra.mxu0 0.0
    %180 = vmatprep.subr.mxu0 0.0
    %181 = vmatpush1.msra.mxu0 0.0
    %182 = vmatprep.subr.mxu0 0.0
    %183 = vmatpush1.msra.mxu0 0.0
    %184 = vmatprep.subr.mxu0 0.0
    %185 = vmatpush1.msra.mxu0 0.0
    %186 = vmatprep.subr.mxu0 0.0
    %187 = vmatpush1.msra.mxu0 0.0
    %188 = vmatprep.subr.mxu0 0.0
    %189 = vmatpush1.msra.mxu0 0.0
    %190 = vmatprep.subr.mxu0 0.0
    %191 = vmatpush1.msra.mxu0 0.0
    %192 = vmatprep.subr.mxu0 0.0
    %193 = vmatpush1.msra.mxu0 0.0
    %194 = vmatprep.subr.mxu0 0.0
    %195 = vmatpush1.msra.mxu0 0.0
    %196 = vmatprep.subr.mxu0 0.0
    %197 = vmatpush1.msra.mxu0 0.0
    %198 = vmatprep.subr.mxu0 0.0
    %199 = vmatpush1.msra.mxu0 0.0
    %200 = vmatprep.subr.mxu0 0.0
    %201 = vmatpush1.msra.mxu0 0.0
    %202 = vmatprep.subr.mxu0 0.0
    %203 = vmatpush1.msra.mxu0 0.0
    %204 = vmatprep.mubr.f32.mxu0 0.0
    %205 = vmatmul.mubr.f32.gmra.mrb[0].mxu0 %v61
    %v206 = vpop.f32.mrb[0].mxu0
    %v207 = vadd.f32 0.0, %v206
    %v208 = vpop.f32.mrb[0].mxu0
    %209 = vdwg.mxu0
    %s210 = scalar_lea.vmem [#allocation2], 8
    %211 = vst.msk [vmem:[%s210] sm:$0xff] %vm59, %v207
    %s212 = scalar_lea.vmem [#allocation7], 64
    %v213 = vld [vmem:[%s212] sm:$0xff]
    %v214 = vld [vmem:[%s212 + $0x8] sm:$0xff]
    %v215 = vld [vmem:[%s212 + $0x10] sm:$0xff]
    %v216 = vld [vmem:[%s212 + $0x18] sm:$0xff]
    %217 = vmatprep.subr.mxu0 0.0
    %218 = vmatpush1.msra.mxu0 %v213
    %219 = vmatprep.subr.mxu0 0.0
    %220 = vmatpush1.msra.mxu0 %v214
    %221 = vmatprep.subr.mxu0 0.0
    %222 = vmatpush1.msra.mxu0 %v215
    %223 = vmatprep.subr.mxu0 0.0
    %224 = vmatpush1.msra.mxu0 %v216
    %225 = vmatprep.subr.mxu0 0.0
    %226 = vmatpush1.msra.mxu0 0.0
    %227 = vmatprep.subr.mxu0 0.0
    %228 = vmatpush1.msra.mxu0 0.0
    %229 = vmatprep.subr.mxu0 0.0
    %230 = vmatpush1.msra.mxu0 0.0
    %231 = vmatprep.subr.mxu0 0.0
    %232 = vmatpush1.msra.mxu0 0.0
    %233 = vmatprep.subr.mxu0 0.0
    %234 = vmatpush1.msra.mxu0 0.0
    %235 = vmatprep.subr.mxu0 0.0
    %236 = vmatpush1.msra.mxu0 0.0
    %237 = vmatprep.subr.mxu0 0.0
    %238 = vmatpush1.msra.mxu0 0.0
    %239 = vmatprep.subr.mxu0 0.0
    %240 = vmatpush1.msra.mxu0 0.0
    %241 = vmatprep.subr.mxu0 0.0
    %242 = vmatpush1.msra.mxu0 0.0
    %243 = vmatprep.subr.mxu0 0.0
    %244 = vmatpush1.msra.mxu0 0.0
    %245 = vmatprep.subr.mxu0 0.0
    %246 = vmatpush1.msra.mxu0 0.0
    %247 = vmatprep.subr.mxu0 0.0
    %248 = vmatpush1.msra.mxu0 0.0
    %249 = vmatprep.subr.mxu0 0.0
    %250 = vmatpush1.msra.mxu0 0.0
    %251 = vmatprep.subr.mxu0 0.0
    %252 = vmatpush1.msra.mxu0 0.0
    %253 = vmatprep.subr.mxu0 0.0
    %254 = vmatpush1.msra.mxu0 0.0
    %255 = vmatprep.subr.mxu0 0.0
    %256 = vmatpush1.msra.mxu0 0.0
    %257 = vmatprep.subr.mxu0 0.0
    %258 = vmatpush1.msra.mxu0 0.0
    %259 = vmatprep.subr.mxu0 0.0
    %260 = vmatpush1.msra.mxu0 0.0
    %261 = vmatprep.subr.mxu0 0.0
    %262 = vmatpush1.msra.mxu0 0.0
    %263 = vmatprep.subr.mxu0 0.0
    %264 = vmatpush1.msra.mxu0 0.0
    %265 = vmatprep.subr.mxu0 0.0
    %266 = vmatpush1.msra.mxu0 0.0
    %267 = vmatprep.subr.mxu0 0.0
    %268 = vmatpush1.msra.mxu0 0.0
    %269 = vmatprep.subr.mxu0 0.0
    %270 = vmatpush1.msra.mxu0 0.0
    %271 = vmatprep.subr.mxu0 0.0
    %272 = vmatpush1.msra.mxu0 0.0
    %273 = vmatprep.subr.mxu0 0.0
    %274 = vmatpush1.msra.mxu0 0.0
    %275 = vmatprep.subr.mxu0 0.0
    %276 = vmatpush1.msra.mxu0 0.0
    %277 = vmatprep.subr.mxu0 0.0
    %278 = vmatpush1.msra.mxu0 0.0
    %279 = vmatprep.subr.mxu0 0.0
    %280 = vmatpush1.msra.mxu0 0.0
    %281 = vmatprep.mubr.f32.mxu0 0.0
    %282 = vmatmul.mubr.f32.gmra.mrb[0].mxu0 %v61
    %v283 = vpop.f32.mrb[0].mxu0
    %v284 = vadd.f32 0.0, %v283
    %v285 = vpop.f32.mrb[0].mxu0
    %286 = vdwg.mxu0
    %s287 = scalar_lea.vmem [#allocation2], 16
    %288 = vst.msk [vmem:[%s287] sm:$0xff] %vm59, %v284
    %v289 = vld [vmem:[#allocation2] sm:$0xff]
    %v290 = vld [vmem:[%s210] sm:$0xff]
    %v291 = vld [vmem:[%s287] sm:$0xff]
    %vm292 = vcmask 64512
    %v294 = vsel %vm292, %v289, 0
    %v297 = vsel %vm292, %v290, 0
    %299 = vmatprep.subr.mxu0 0.0
    %300 = vmatpush1.xpose.msra.mxu0 %v297
    %301 = vmatprep.subr.mxu0 0.0
    %302 = vmatpush1.xpose.msra.mxu0 0.0
    %303 = vmatprep.subr.mxu0 0.0
    %304 = vmatpush1.xpose.msra.mxu0 0.0
    %305 = vmatprep.subr.mxu0 0.0
    %306 = vmatpush1.xpose.msra.mxu0 0.0
    %307 = vmatprep.subr.mxu0 0.0
    %308 = vmatpush1.xpose.msra.mxu0 0.0
    %309 = vmatprep.subr.mxu0 0.0
    %310 = vmatpush1.xpose.msra.mxu0 0.0
    %311 = vmatprep.subr.mxu0 0.0
    %312 = vmatpush1.xpose.msra.mxu0 0.0
    %313 = vmatprep.subr.mxu0 0.0
    %314 = vmatpush1.xpose.msra.mxu0 0.0
    %315 = vmatprep.subr.mxu0 0.0
    %316 = vmatpush1.xpose.msra.mxu0 0.0
    %317 = vmatprep.subr.mxu0 0.0
    %318 = vmatpush1.xpose.msra.mxu0 0.0
    %319 = vmatprep.subr.mxu0 0.0
    %320 = vmatpush1.xpose.msra.mxu0 0.0
    %321 = vmatprep.subr.mxu0 0.0
    %322 = vmatpush1.xpose.msra.mxu0 0.0
    %323 = vmatprep.subr.mxu0 0.0
    %324 = vmatpush1.xpose.msra.mxu0 0.0
    %325 = vmatprep.subr.mxu0 0.0
    %326 = vmatpush1.xpose.msra.mxu0 0.0
    %327 = vmatprep.subr.mxu0 0.0
    %328 = vmatpush1.xpose.msra.mxu0 0.0
    %329 = vmatprep.subr.mxu0 0.0
    %330 = vmatpush1.xpose.msra.mxu0 0.0
    %331 = vmatprep.subr.mxu0 0.0
    %332 = vmatpush1.xpose.msra.mxu0 0.0
    %333 = vmatprep.subr.mxu0 0.0
    %334 = vmatpush1.xpose.msra.mxu0 0.0
    %335 = vmatprep.subr.mxu0 0.0
    %336 = vmatpush1.xpose.msra.mxu0 0.0
    %337 = vmatprep.subr.mxu0 0.0
    %338 = vmatpush1.xpose.msra.mxu0 0.0
    %339 = vmatprep.subr.mxu0 0.0
    %340 = vmatpush1.xpose.msra.mxu0 0.0
    %341 = vmatprep.subr.mxu0 0.0
    %342 = vmatpush1.xpose.msra.mxu0 0.0
    %343 = vmatprep.subr.mxu0 0.0
    %344 = vmatpush1.xpose.msra.mxu0 0.0
    %345 = vmatprep.subr.mxu0 0.0
    %346 = vmatpush1.xpose.msra.mxu0 0.0
    %347 = vmatprep.subr.mxu0 0.0
    %348 = vmatpush1.xpose.msra.mxu0 0.0
    %349 = vmatprep.subr.mxu0 0.0
    %350 = vmatpush1.xpose.msra.mxu0 0.0
    %351 = vmatprep.subr.mxu0 0.0
    %352 = vmatpush1.xpose.msra.mxu0 0.0
    %353 = vmatprep.subr.mxu0 0.0
    %354 = vmatpush1.xpose.msra.mxu0 0.0
    %355 = vmatprep.subr.mxu0 0.0
    %356 = vmatpush1.xpose.msra.mxu0 0.0
    %357 = vmatprep.subr.mxu0 0.0
    %358 = vmatpush1.xpose.msra.mxu0 0.0
    %359 = vmatprep.subr.mxu0 0.0
    %360 = vmatpush1.xpose.msra.mxu0 0.0
    %361 = vmatprep.subr.mxu0 0.0
    %362 = vmatpush1.xpose.msra.mxu0 0.0
    %363 = vmatprep.mubr.f32.mxu0 0.0
    %364 = vmatmul.mubr.f32.gmra.mrb[0].mxu0 %v294
    %v365 = vpop.f32.mrb[0].mxu0
    %v366 = vadd.f32 0.0, %v365
    %v367 = vpop.f32.mrb[0].mxu0
    %368 = vdwg.mxu0
    %v369 = vsel %vm292, %v366, -inf
    %370 = vmax.xlane.f32.xlu0 %v369
    %v371 = vpop.xlane.xlu0 %370
    %v372 = vsub.f32 %v366, %v371
    %v373 = vmul.f32 %v372, 1.442695
    %v374 = vpow.pop %v373
    %v375 = vsel %vm292, %v374, 0.0
    %376 = vadd.xlane.f32.xlu0 %v375
    %v377 = vpop.xlane.xlu0 %376
    %v378 = vrcp.pop %v377
    %v379 = vmul.f32 %v374, %v378
    %v381 = vsel %vm292, %v379, 0
    %383 = vmatprep.subr.mxu0 0.0
    %384 = vmatpush1.msra.mxu0 %v291
    %385 = vmatprep.subr.mxu0 0.0
    %386 = vmatpush1.msra.mxu0 0.0
    %387 = vmatprep.subr.mxu0 0.0
    %388 = vmatpush1.msra.mxu0 0.0
    %389 = vmatprep.subr.mxu0 0.0
    %390 = vmatpush1.msra.mxu0 0.0
    %391 = vmatprep.subr.mxu0 0.0
    %392 = vmatpush1.msra.mxu0 0.0
    %393 = vmatprep.subr.mxu0 0.0
    %394 = vmatpush1.msra.mxu0 0.0
    %395 = vmatprep.subr.mxu0 0.0
    %396 = vmatpush1.msra.mxu0 0.0
    %397 = vmatprep.subr.mxu0 0.0
    %398 = vmatpush1.msra.mxu0 0.0
    %399 = vmatprep.subr.mxu0 0.0
    %400 = vmatpush1.msra.mxu0 0.0
    %401 = vmatprep.subr.mxu0 0.0
    %402 = vmatpush1.msra.mxu0 0.0
    %403 = vmatprep.subr.mxu0 0.0
    %404 = vmatpush1.msra.mxu0 0.0
    %405 = vmatprep.subr.mxu0 0.0
    %406 = vmatpush1.msra.mxu0 0.0
    %407 = vmatprep.subr.mxu0 0.0
    %408 = vmatpush1.msra.mxu0 0.0
    %409 = vmatprep.subr.mxu0 0.0
    %410 = vmatpush1.msra.mxu0 0.0
    %411 = vmatprep.subr.mxu0 0.0
    %412 = vmatpush1.msra.mxu0 0.0
    %413 = vmatprep.subr.mxu0 0.0
    %414 = vmatpush1.msra.mxu0 0.0
    %415 = vmatprep.subr.mxu0 0.0
    %416 = vmatpush1.msra.mxu0 0.0
    %417 = vmatprep.subr.mxu0 0.0
    %418 = vmatpush1.msra.mxu0 0.0
    %419 = vmatprep.subr.mxu0 0.0
    %420 = vmatpush1.msra.mxu0 0.0
    %421 = vmatprep.subr.mxu0 0.0
    %422 = vmatpush1.msra.mxu0 0.0
    %423 = vmatprep.subr.mxu0 0.0
    %424 = vmatpush1.msra.mxu0 0.0
    %425 = vmatprep.subr.mxu0 0.0
    %426 = vmatpush1.msra.mxu0 0.0
    %427 = vmatprep.subr.mxu0 0.0
    %428 = vmatpush1.msra.mxu0 0.0
    %429 = vmatprep.subr.mxu0 0.0
    %430 = vmatpush1.msra.mxu0 0.0
    %431 = vmatprep.subr.mxu0 0.0
    %432 = vmatpush1.msra.mxu0 0.0
    %433 = vmatprep.subr.mxu0 0.0
    %434 = vmatpush1.msra.mxu0 0.0
    %435 = vmatprep.subr.mxu0 0.0
    %436 = vmatpush1.msra.mxu0 0.0
    %437 = vmatprep.subr.mxu0 0.0
    %438 = vmatpush1.msra.mxu0 0.0
    %439 = vmatprep.subr.mxu0 0.0
    %440 = vmatpush1.msra.mxu0 0.0
    %441 = vmatprep.subr.mxu0 0.0
    %442 = vmatpush1.msra.mxu0 0.0
    %443 = vmatprep.subr.mxu0 0.0
    %444 = vmatpush1.msra.mxu0 0.0
    %445 = vmatprep.subr.mxu0 0.0
    %446 = vmatpush1.msra.mxu0 0.0
    %447 = vmatprep.mubr.f32.mxu0 0.0
    %448 = vmatmul.mubr.f32.gmra.mrb[0].mxu0 %v381
    %v449 = vpop.f32.mrb[0].mxu0
    %v450 = vadd.f32 0.0, %v449
    %v451 = vpop.f32.mrb[0].mxu0
    %452 = vdwg.mxu0
    %453 = vrot.lane.b32.xlu0 %v289, 120
    %v454 = vpop.permute.xlu0 %453
    %455 = vrot.lane.b32.xlu0 %v290, 120
    %v456 = vpop.permute.xlu0 %455
    %v457 = vsel %vm292, %v454, 0
    %v459 = vsel %vm292, %v456, 0
    %461 = vmatprep.subr.mxu0 0.0
    %462 = vmatpush1.xpose.msra.mxu0 %v459
    %463 = vmatprep.subr.mxu0 0.0
    %464 = vmatpush1.xpose.msra.mxu0 0.0
    %465 = vmatprep.subr.mxu0 0.0
    %466 = vmatpush1.xpose.msra.mxu0 0.0
    %467 = vmatprep.subr.mxu0 0.0
    %468 = vmatpush1.xpose.msra.mxu0 0.0
    %469 = vmatprep.subr.mxu0 0.0
    %470 = vmatpush1.xpose.msra.mxu0 0.0
    %471 = vmatprep.subr.mxu0 0.0
    %472 = vmatpush1.xpose.msra.mxu0 0.0
    %473 = vmatprep.subr.mxu0 0.0
    %474 = vmatpush1.xpose.msra.mxu0 0.0
    %475 = vmatprep.subr.mxu0 0.0
    %476 = vmatpush1.xpose.msra.mxu0 0.0
    %477 = vmatprep.subr.mxu0 0.0
    %478 = vmatpush1.xpose.msra.mxu0 0.0
    %479 = vmatprep.subr.mxu0 0.0
    %480 = vmatpush1.xpose.msra.mxu0 0.0
    %481 = vmatprep.subr.mxu0 0.0
    %482 = vmatpush1.xpose.msra.mxu0 0.0
    %483 = vmatprep.subr.mxu0 0.0
    %484 = vmatpush1.xpose.msra.mxu0 0.0
    %485 = vmatprep.subr.mxu0 0.0
    %486 = vmatpush1.xpose.msra.mxu0 0.0
    %487 = vmatprep.subr.mxu0 0.0
    %488 = vmatpush1.xpose.msra.mxu0 0.0
    %489 = vmatprep.subr.mxu0 0.0
    %490 = vmatpush1.xpose.msra.mxu0 0.0
    %491 = vmatprep.subr.mxu0 0.0
    %492 = vmatpush1.xpose.msra.mxu0 0.0
    %493 = vmatprep.subr.mxu0 0.0
    %494 = vmatpush1.xpose.msra.mxu0 0.0
    %495 = vmatprep.subr.mxu0 0.0
    %496 = vmatpush1.xpose.msra.mxu0 0.0
    %497 = vmatprep.subr.mxu0 0.0
    %498 = vmatpush1.xpose.msra.mxu0 0.0
    %499 = vmatprep.subr.mxu0 0.0
    %500 = vmatpush1.xpose.msra.mxu0 0.0
    %501 = vmatprep.subr.mxu0 0.0
    %502 = vmatpush1.xpose.msra.mxu0 0.0
    %503 = vmatprep.subr.mxu0 0.0
    %504 = vmatpush1.xpose.msra.mxu0 0.0
    %505 = vmatprep.subr.mxu0 0.0
    %506 = vmatpush1.xpose.msra.mxu0 0.0
    %507 = vmatprep.subr.mxu0 0.0
    %508 = vmatpush1.xpose.msra.mxu0 0.0
    %509 = vmatprep.subr.mxu0 0.0
    %510 = vmatpush1.xpose.msra.mxu0 0.0
    %511 = vmatprep.subr.mxu0 0.0
    %512 = vmatpush1.xpose.msra.mxu0 0.0
    %513 = vmatprep.subr.mxu0 0.0
    %514 = vmatpush1.xpose.msra.mxu0 0.0
    %515 = vmatprep.subr.mxu0 0.0
    %516 = vmatpush1.xpose.msra.mxu0 0.0
    %517 = vmatprep.subr.mxu0 0.0
    %518 = vmatpush1.xpose.msra.mxu0 0.0
    %519 = vmatprep.subr.mxu0 0.0
    %520 = vmatpush1.xpose.msra.mxu0 0.0
    %521 = vmatprep.subr.mxu0 0.0
    %522 = vmatpush1.xpose.msra.mxu0 0.0
    %523 = vmatprep.subr.mxu0 0.0
    %524 = vmatpush1.xpose.msra.mxu0 0.0
    %525 = vmatprep.mubr.f32.mxu0 0.0
    %526 = vmatmul.mubr.f32.gmra.mrb[0].mxu0 %v457
    %v527 = vpop.f32.mrb[0].mxu0
    %v528 = vadd.f32 0.0, %v527
    %v529 = vpop.f32.mrb[0].mxu0
    %530 = vdwg.mxu0
    %v531 = vsel %vm292, %v528, -inf
    %532 = vmax.xlane.f32.xlu0 %v531
    %v533 = vpop.xlane.xlu0 %532
    %v534 = vsub.f32 %v528, %v533
    %v535 = vmul.f32 %v534, 1.442695
    %v536 = vpow.pop %v535
    %v537 = vsel %vm292, %v536, 0.0
    %538 = vadd.xlane.f32.xlu0 %v537
    %v539 = vpop.xlane.xlu0 %538
    %v540 = vrcp.pop %v539
    %v541 = vmul.f32 %v536, %v540
    %543 = vrot.lane.b32.xlu0 %v291, 120
    %v544 = vpop.permute.xlu0 %543
    %v547 = vsel %vm292, %v541, 0
    %549 = vmatprep.subr.mxu0 0.0
    %550 = vmatpush1.msra.mxu0 %v544
    %551 = vmatprep.subr.mxu0 0.0
    %552 = vmatpush1.msra.mxu0 0.0
    %553 = vmatprep.subr.mxu0 0.0
    %554 = vmatpush1.msra.mxu0 0.0
    %555 = vmatprep.subr.mxu0 0.0
    %556 = vmatpush1.msra.mxu0 0.0
    %557 = vmatprep.subr.mxu0 0.0
    %558 = vmatpush1.msra.mxu0 0.0
    %559 = vmatprep.subr.mxu0 0.0
    %560 = vmatpush1.msra.mxu0 0.0
    %561 = vmatprep.subr.mxu0 0.0
    %562 = vmatpush1.msra.mxu0 0.0
    %563 = vmatprep.subr.mxu0 0.0
    %564 = vmatpush1.msra.mxu0 0.0
    %565 = vmatprep.subr.mxu0 0.0
    %566 = vmatpush1.msra.mxu0 0.0
    %567 = vmatprep.subr.mxu0 0.0
    %568 = vmatpush1.msra.mxu0 0.0
    %569 = vmatprep.subr.mxu0 0.0
    %570 = vmatpush1.msra.mxu0 0.0
    %571 = vmatprep.subr.mxu0 0.0
    %572 = vmatpush1.msra.mxu0 0.0
    %573 = vmatprep.subr.mxu0 0.0
    %574 = vmatpush1.msra.mxu0 0.0
    %575 = vmatprep.subr.mxu0 0.0
    %576 = vmatpush1.msra.mxu0 0.0
    %577 = vmatprep.subr.mxu0 0.0
    %578 = vmatpush1.msra.mxu0 0.0
    %579 = vmatprep.subr.mxu0 0.0
    %580 = vmatpush1.msra.mxu0 0.0
    %581 = vmatprep.subr.mxu0 0.0
    %582 = vmatpush1.msra.mxu0 0.0
    %583 = vmatprep.subr.mxu0 0.0
    %584 = vmatpush1.msra.mxu0 0.0
    %585 = vmatprep.subr.mxu0 0.0
    %586 = vmatpush1.msra.mxu0 0.0
    %587 = vmatprep.subr.mxu0 0.0
    %588 = vmatpush1.msra.mxu0 0.0
    %589 = vmatprep.subr.mxu0 0.0
    %590 = vmatpush1.msra.mxu0 0.0
    %591 = vmatprep.subr.mxu0 0.0
    %592 = vmatpush1.msra.mxu0 0.0
    %593 = vmatprep.subr.mxu0 0.0
    %594 = vmatpush1.msra.mxu0 0.0
    %595 = vmatprep.subr.mxu0 0.0
    %596 = vmatpush1.msra.mxu0 0.0
    %597 = vmatprep.subr.mxu0 0.0
    %598 = vmatpush1.msra.mxu0 0.0
    %599 = vmatprep.subr.mxu0 0.0
    %600 = vmatpush1.msra.mxu0 0.0
    %601 = vmatprep.subr.mxu0 0.0
    %602 = vmatpush1.msra.mxu0 0.0
    %603 = vmatprep.subr.mxu0 0.0
    %604 = vmatpush1.msra.mxu0 0.0
    %605 = vmatprep.subr.mxu0 0.0
    %606 = vmatpush1.msra.mxu0 0.0
    %607 = vmatprep.subr.mxu0 0.0
    %608 = vmatpush1.msra.mxu0 0.0
    %609 = vmatprep.subr.mxu0 0.0
    %610 = vmatpush1.msra.mxu0 0.0
    %611 = vmatprep.subr.mxu0 0.0
    %612 = vmatpush1.msra.mxu0 0.0
    %613 = vmatprep.mubr.f32.mxu0 0.0
    %614 = vmatmul.mubr.f32.gmra.mrb[0].mxu0 %v547
    %v615 = vpop.f32.mrb[0].mxu0
    %v616 = vadd.f32 0.0, %v615
    %v617 = vpop.f32.mrb[0].mxu0
    %618 = vdwg.mxu0
    %619 = vrot.lane.b32.xlu0 %v289, 112
    %v620 = vpop.permute.xlu0 %619
    %621 = vrot.lane.b32.xlu0 %v290, 112
    %v622 = vpop.permute.xlu0 %621
    %v623 = vsel %vm292, %v620, 0
    %v625 = vsel %vm292, %v622, 0
    %627 = vmatprep.subr.mxu0 0.0
    %628 = vmatpush1.xpose.msra.mxu0 %v625
    %629 = vmatprep.subr.mxu0 0.0
    %630 = vmatpush1.xpose.msra.mxu0 0.0
    %631 = vmatprep.subr.mxu0 0.0
    %632 = vmatpush1.xpose.msra.mxu0 0.0
    %633 = vmatprep.subr.mxu0 0.0
    %634 = vmatpush1.xpose.msra.mxu0 0.0
    %635 = vmatprep.subr.mxu0 0.0
    %636 = vmatpush1.xpose.msra.mxu0 0.0
    %637 = vmatprep.subr.mxu0 0.0
    %638 = vmatpush1.xpose.msra.mxu0 0.0
    %639 = vmatprep.subr.mxu0 0.0
    %640 = vmatpush1.xpose.msra.mxu0 0.0
    %641 = vmatprep.subr.mxu0 0.0
    %642 = vmatpush1.xpose.msra.mxu0 0.0
    %643 = vmatprep.subr.mxu0 0.0
    %644 = vmatpush1.xpose.msra.mxu0 0.0
    %645 = vmatprep.subr.mxu0 0.0
    %646 = vmatpush1.xpose.msra.mxu0 0.0
    %647 = vmatprep.subr.mxu0 0.0
    %648 = vmatpush1.xpose.msra.mxu0 0.0
    %649 = vmatprep.subr.mxu0 0.0
    %650 = vmatpush1.xpose.msra.mxu0 0.0
    %651 = vmatprep.subr.mxu0 0.0
    %652 = vmatpush1.xpose.msra.mxu0 0.0
    %653 = vmatprep.subr.mxu0 0.0
    %654 = vmatpush1.xpose.msra.mxu0 0.0
    %655 = vmatprep.subr.mxu0 0.0
    %656 = vmatpush1.xpose.msra.mxu0 0.0
    %657 = vmatprep.subr.mxu0 0.0
    %658 = vmatpush1.xpose.msra.mxu0 0.0
    %659 = vmatprep.subr.mxu0 0.0
    %660 = vmatpush1.xpose.msra.mxu0 0.0
    %661 = vmatprep.subr.mxu0 0.0
    %662 = vmatpush1.xpose.msra.mxu0 0.0
    %663 = vmatprep.subr.mxu0 0.0
    %664 = vmatpush1.xpose.msra.mxu0 0.0
    %665 = vmatprep.subr.mxu0 0.0
    %666 = vmatpush1.xpose.msra.mxu0 0.0
    %667 = vmatprep.subr.mxu0 0.0
    %668 = vmatpush1.xpose.msra.mxu0 0.0
    %669 = vmatprep.subr.mxu0 0.0
    %670 = vmatpush1.xpose.msra.mxu0 0.0
    %671 = vmatprep.subr.mxu0 0.0
    %672 = vmatpush1.xpose.msra.mxu0 0.0
    %673 = vmatprep.subr.mxu0 0.0
    %674 = vmatpush1.xpose.msra.mxu0 0.0
    %675 = vmatprep.subr.mxu0 0.0
    %676 = vmatpush1.xpose.msra.mxu0 0.0
    %677 = vmatprep.subr.mxu0 0.0
    %678 = vmatpush1.xpose.msra.mxu0 0.0
    %679 = vmatprep.subr.mxu0 0.0
    %680 = vmatpush1.xpose.msra.mxu0 0.0
    %681 = vmatprep.subr.mxu0 0.0
    %682 = vmatpush1.xpose.msra.mxu0 0.0
    %683 = vmatprep.subr.mxu0 0.0
    %684 = vmatpush1.xpose.msra.mxu0 0.0
    %685 = vmatprep.subr.mxu0 0.0
    %686 = vmatpush1.xpose.msra.mxu0 0.0
    %687 = vmatprep.subr.mxu0 0.0
    %688 = vmatpush1.xpose.msra.mxu0 0.0
    %689 = vmatprep.subr.mxu0 0.0
    %690 = vmatpush1.xpose.msra.mxu0 0.0
    %691 = vmatprep.mubr.f32.mxu0 0.0
    %692 = vmatmul.mubr.f32.gmra.mrb[0].mxu0 %v623
    %v693 = vpop.f32.mrb[0].mxu0
    %v694 = vadd.f32 0.0, %v693
    %v695 = vpop.f32.mrb[0].mxu0
    %696 = vdwg.mxu0
    %v697 = vsel %vm292, %v694, -inf
    %698 = vmax.xlane.f32.xlu0 %v697
    %v699 = vpop.xlane.xlu0 %698
    %v700 = vsub.f32 %v694, %v699
    %v701 = vmul.f32 %v700, 1.442695
    %v702 = vpow.pop %v701
    %v703 = vsel %vm292, %v702, 0.0
    %704 = vadd.xlane.f32.xlu0 %v703
    %v705 = vpop.xlane.xlu0 %704
    %v706 = vrcp.pop %v705
    %v707 = vmul.f32 %v702, %v706
    %708 = vrot.lane.b32.xlu0 %v291, 112
    %v709 = vpop.permute.xlu0 %708
    %v712 = vsel %vm292, %v707, 0
    %714 = vmatprep.subr.mxu0 0.0
    %715 = vmatpush1.msra.mxu0 %v709
    %716 = vmatprep.subr.mxu0 0.0
    %717 = vmatpush1.msra.mxu0 0.0
    %718 = vmatprep.subr.mxu0 0.0
    %719 = vmatpush1.msra.mxu0 0.0
    %720 = vmatprep.subr.mxu0 0.0
    %721 = vmatpush1.msra.mxu0 0.0
    %722 = vmatprep.subr.mxu0 0.0
    %723 = vmatpush1.msra.mxu0 0.0
    %724 = vmatprep.subr.mxu0 0.0
    %725 = vmatpush1.msra.mxu0 0.0
    %726 = vmatprep.subr.mxu0 0.0
    %727 = vmatpush1.msra.mxu0 0.0
    %728 = vmatprep.subr.mxu0 0.0
    %729 = vmatpush1.msra.mxu0 0.0
    %730 = vmatprep.subr.mxu0 0.0
    %731 = vmatpush1.msra.mxu0 0.0
    %732 = vmatprep.subr.mxu0 0.0
    %733 = vmatpush1.msra.mxu0 0.0
    %734 = vmatprep.subr.mxu0 0.0
    %735 = vmatpush1.msra.mxu0 0.0
    %736 = vmatprep.subr.mxu0 0.0
    %737 = vmatpush1.msra.mxu0 0.0
    %738 = vmatprep.subr.mxu0 0.0
    %739 = vmatpush1.msra.mxu0 0.0
    %740 = vmatprep.subr.mxu0 0.0
    %741 = vmatpush1.msra.mxu0 0.0
    %742 = vmatprep.subr.mxu0 0.0
    %743 = vmatpush1.msra.mxu0 0.0
    %744 = vmatprep.subr.mxu0 0.0
    %745 = vmatpush1.msra.mxu0 0.0
    %746 = vmatprep.subr.mxu0 0.0
    %747 = vmatpush1.msra.mxu0 0.0
    %748 = vmatprep.subr.mxu0 0.0
    %749 = vmatpush1.msra.mxu0 0.0
    %750 = vmatprep.subr.mxu0 0.0
    %751 = vmatpush1.msra.mxu0 0.0
    %752 = vmatprep.subr.mxu0 0.0
    %753 = vmatpush1.msra.mxu0 0.0
    %754 = vmatprep.subr.mxu0 0.0
    %755 = vmatpush1.msra.mxu0 0.0
    %756 = vmatprep.subr.mxu0 0.0
    %757 = vmatpush1.msra.mxu0 0.0
    %758 = vmatprep.subr.mxu0 0.0
    %759 = vmatpush1.msra.mxu0 0.0
    %760 = vmatprep.subr.mxu0 0.0
    %761 = vmatpush1.msra.mxu0 0.0
    %762 = vmatprep.subr.mxu0 0.0
    %763 = vmatpush1.msra.mxu0 0.0
    %764 = vmatprep.subr.mxu0 0.0
    %765 = vmatpush1.msra.mxu0 0.0
    %766 = vmatprep.subr.mxu0 0.0
    %767 = vmatpush1.msra.mxu0 0.0
    %768 = vmatprep.subr.mxu0 0.0
    %769 = vmatpush1.msra.mxu0 0.0
    %770 = vmatprep.subr.mxu0 0.0
    %771 = vmatpush1.msra.mxu0 0.0
    %772 = vmatprep.subr.mxu0 0.0
    %773 = vmatpush1.msra.mxu0 0.0
    %774 = vmatprep.subr.mxu0 0.0
    %775 = vmatpush1.msra.mxu0 0.0
    %776 = vmatprep.subr.mxu0 0.0
    %777 = vmatpush1.msra.mxu0 0.0
    %778 = vmatprep.mubr.f32.mxu0 0.0
    %779 = vmatmul.mubr.f32.gmra.mrb[0].mxu0 %v712
    %v780 = vpop.f32.mrb[0].mxu0
    %v781 = vadd.f32 0.0, %v780
    %v782 = vpop.f32.mrb[0].mxu0
    %783 = vdwg.mxu0
    %784 = vrot.lane.b32.xlu0 %v289, 104
    %v785 = vpop.permute.xlu0 %784
    %786 = vrot.lane.b32.xlu0 %v290, 104
    %v787 = vpop.permute.xlu0 %786
    %v788 = vsel %vm292, %v785, 0
    %v790 = vsel %vm292, %v787, 0
    %792 = vmatprep.subr.mxu0 0.0
    %793 = vmatpush1.xpose.msra.mxu0 %v790
    %794 = vmatprep.subr.mxu0 0.0
    %795 = vmatpush1.xpose.msra.mxu0 0.0
    %796 = vmatprep.subr.mxu0 0.0
    %797 = vmatpush1.xpose.msra.mxu0 0.0
    %798 = vmatprep.subr.mxu0 0.0
    %799 = vmatpush1.xpose.msra.mxu0 0.0
    %800 = vmatprep.subr.mxu0 0.0
    %801 = vmatpush1.xpose.msra.mxu0 0.0
    %802 = vmatprep.subr.mxu0 0.0
    %803 = vmatpush1.xpose.msra.mxu0 0.0
    %804 = vmatprep.subr.mxu0 0.0
    %805 = vmatpush1.xpose.msra.mxu0 0.0
    %806 = vmatprep.subr.mxu0 0.0
    %807 = vmatpush1.xpose.msra.mxu0 0.0
    %808 = vmatprep.subr.mxu0 0.0
    %809 = vmatpush1.xpose.msra.mxu0 0.0
    %810 = vmatprep.subr.mxu0 0.0
    %811 = vmatpush1.xpose.msra.mxu0 0.0
    %812 = vmatprep.subr.mxu0 0.0
    %813 = vmatpush1.xpose.msra.mxu0 0.0
    %814 = vmatprep.subr.mxu0 0.0
    %815 = vmatpush1.xpose.msra.mxu0 0.0
    %816 = vmatprep.subr.mxu0 0.0
    %817 = vmatpush1.xpose.msra.mxu0 0.0
    %818 = vmatprep.subr.mxu0 0.0
    %819 = vmatpush1.xpose.msra.mxu0 0.0
    %820 = vmatprep.subr.mxu0 0.0
    %821 = vmatpush1.xpose.msra.mxu0 0.0
    %822 = vmatprep.subr.mxu0 0.0
    %823 = vmatpush1.xpose.msra.mxu0 0.0
    %824 = vmatprep.subr.mxu0 0.0
    %825 = vmatpush1.xpose.msra.mxu0 0.0
    %826 = vmatprep.subr.mxu0 0.0
    %827 = vmatpush1.xpose.msra.mxu0 0.0
    %828 = vmatprep.subr.mxu0 0.0
    %829 = vmatpush1.xpose.msra.mxu0 0.0
    %830 = vmatprep.subr.mxu0 0.0
    %831 = vmatpush1.xpose.msra.mxu0 0.0
    %832 = vmatprep.subr.mxu0 0.0
    %833 = vmatpush1.xpose.msra.mxu0 0.0
    %834 = vmatprep.subr.mxu0 0.0
    %835 = vmatpush1.xpose.msra.mxu0 0.0
    %836 = vmatprep.subr.mxu0 0.0
    %837 = vmatpush1.xpose.msra.mxu0 0.0
    %838 = vmatprep.subr.mxu0 0.0
    %839 = vmatpush1.xpose.msra.mxu0 0.0
    %840 = vmatprep.subr.mxu0 0.0
    %841 = vmatpush1.xpose.msra.mxu0 0.0
    %842 = vmatprep.subr.mxu0 0.0
    %843 = vmatpush1.xpose.msra.mxu0 0.0
    %844 = vmatprep.subr.mxu0 0.0
    %845 = vmatpush1.xpose.msra.mxu0 0.0
    %846 = vmatprep.subr.mxu0 0.0
    %847 = vmatpush1.xpose.msra.mxu0 0.0
    %848 = vmatprep.subr.mxu0 0.0
    %849 = vmatpush1.xpose.msra.mxu0 0.0
    %850 = vmatprep.subr.mxu0 0.0
    %851 = vmatpush1.xpose.msra.mxu0 0.0
    %852 = vmatprep.subr.mxu0 0.0
    %853 = vmatpush1.xpose.msra.mxu0 0.0
    %854 = vmatprep.subr.mxu0 0.0
    %855 = vmatpush1.xpose.msra.mxu0 0.0
    %856 = vmatprep.mubr.f32.mxu0 0.0
    %857 = vmatmul.mubr.f32.gmra.mrb[0].mxu0 %v788
    %v858 = vpop.f32.mrb[0].mxu0
    %v859 = vadd.f32 0.0, %v858
    %v860 = vpop.f32.mrb[0].mxu0
    %861 = vdwg.mxu0
    %v862 = vsel %vm292, %v859, -inf
    %863 = vmax.xlane.f32.xlu0 %v862
    %v864 = vpop.xlane.xlu0 %863
    %v865 = vsub.f32 %v859, %v864
    %v866 = vmul.f32 %v865, 1.442695
    %v867 = vpow.pop %v866
    %v868 = vsel %vm292, %v867, 0.0
    %869 = vadd.xlane.f32.xlu0 %v868
    %v870 = vpop.xlane.xlu0 %869
    %v871 = vrcp.pop %v870
    %v872 = vmul.f32 %v867, %v871
    %873 = vrot.lane.b32.xlu0 %v291, 104
    %v874 = vpop.permute.xlu0 %873
    %v877 = vsel %vm292, %v872, 0
    %879 = vmatprep.subr.mxu0 0.0
    %880 = vmatpush1.msra.mxu0 %v874
    %881 = vmatprep.subr.mxu0 0.0
    %882 = vmatpush1.msra.mxu0 0.0
    %883 = vmatprep.subr.mxu0 0.0
    %884 = vmatpush1.msra.mxu0 0.0
    %885 = vmatprep.subr.mxu0 0.0
    %886 = vmatpush1.msra.mxu0 0.0
    %887 = vmatprep.subr.mxu0 0.0
    %888 = vmatpush1.msra.mxu0 0.0
    %889 = vmatprep.subr.mxu0 0.0
    %890 = vmatpush1.msra.mxu0 0.0
    %891 = vmatprep.subr.mxu0 0.0
    %892 = vmatpush1.msra.mxu0 0.0
    %893 = vmatprep.subr.mxu0 0.0
    %894 = vmatpush1.msra.mxu0 0.0
    %895 = vmatprep.subr.mxu0 0.0
    %896 = vmatpush1.msra.mxu0 0.0
    %897 = vmatprep.subr.mxu0 0.0
    %898 = vmatpush1.msra.mxu0 0.0
    %899 = vmatprep.subr.mxu0 0.0
    %900 = vmatpush1.msra.mxu0 0.0
    %901 = vmatprep.subr.mxu0 0.0
    %902 = vmatpush1.msra.mxu0 0.0
    %903 = vmatprep.subr.mxu0 0.0
    %904 = vmatpush1.msra.mxu0 0.0
    %905 = vmatprep.subr.mxu0 0.0
    %906 = vmatpush1.msra.mxu0 0.0
    %907 = vmatprep.subr.mxu0 0.0
    %908 = vmatpush1.msra.mxu0 0.0
    %909 = vmatprep.subr.mxu0 0.0
    %910 = vmatpush1.msra.mxu0 0.0
    %911 = vmatprep.subr.mxu0 0.0
    %912 = vmatpush1.msra.mxu0 0.0
    %913 = vmatprep.subr.mxu0 0.0
    %914 = vmatpush1.msra.mxu0 0.0
    %915 = vmatprep.subr.mxu0 0.0
    %916 = vmatpush1.msra.mxu0 0.0
    %917 = vmatprep.subr.mxu0 0.0
    %918 = vmatpush1.msra.mxu0 0.0
    %919 = vmatprep.subr.mxu0 0.0
    %920 = vmatpush1.msra.mxu0 0.0
    %921 = vmatprep.subr.mxu0 0.0
    %922 = vmatpush1.msra.mxu0 0.0
    %923 = vmatprep.subr.mxu0 0.0
    %924 = vmatpush1.msra.mxu0 0.0
    %925 = vmatprep.subr.mxu0 0.0
    %926 = vmatpush1.msra.mxu0 0.0
    %927 = vmatprep.subr.mxu0 0.0
    %928 = vmatpush1.msra.mxu0 0.0
    %929 = vmatprep.subr.mxu0 0.0
    %930 = vmatpush1.msra.mxu0 0.0
    %931 = vmatprep.subr.mxu0 0.0
    %932 = vmatpush1.msra.mxu0 0.0
    %933 = vmatprep.subr.mxu0 0.0
    %934 = vmatpush1.msra.mxu0 0.0
    %935 = vmatprep.subr.mxu0 0.0
    %936 = vmatpush1.msra.mxu0 0.0
    %937 = vmatprep.subr.mxu0 0.0
    %938 = vmatpush1.msra.mxu0 0.0
    %939 = vmatprep.subr.mxu0 0.0
    %940 = vmatpush1.msra.mxu0 0.0
    %941 = vmatprep.subr.mxu0 0.0
    %942 = vmatpush1.msra.mxu0 0.0
    %943 = vmatprep.mubr.f32.mxu0 0.0
    %944 = vmatmul.mubr.f32.gmra.mrb[0].mxu0 %v877
    %v945 = vpop.f32.mrb[0].mxu0
    %v946 = vadd.f32 0.0, %v945
    %v947 = vpop.f32.mrb[0].mxu0
    %948 = vdwg.mxu0
    %949 = vxpose.xlu0.b32.start [1/16] %v450, 128
    %950 = vxpose.xlu0.b32.cont [2/16] 0.0, 128
    %951 = vxpose.xlu0.b32.cont [3/16] 0.0, 128
    %952 = vxpose.xlu0.b32.cont [4/16] 0.0, 128
    %953 = vxpose.xlu0.b32.cont [5/16] 0.0, 128
    %954 = vxpose.xlu0.b32.cont [6/16] 0.0, 128
    %955 = vxpose.xlu0.b32.cont [7/16] 0.0, 128
    %956 = vxpose.xlu0.b32.cont [8/16] 0.0, 128
    %957 = vxpose.xlu0.b32.cont [9/16] 0.0, 128
    %958 = vxpose.xlu0.b32.cont [10/16] 0.0, 128
    %959 = vxpose.xlu0.b32.cont [11/16] 0.0, 128
    %960 = vxpose.xlu0.b32.cont [12/16] 0.0, 128
    %961 = vxpose.xlu0.b32.cont [13/16] 0.0, 128
    %962 = vxpose.xlu0.b32.cont [14/16] 0.0, 128
    %963 = vxpose.xlu0.b32.cont [15/16] 0.0, 128
    %964 = vxpose.xlu0.b32.end [16/16] 0.0, 128
    %v965 = vpop.trf.xlu0
    %v966 = vpop.trf.xlu0
    %v967 = vpop.trf.xlu0
    %v968 = vpop.trf.xlu0
    %v969 = vpop.trf.xlu0
    %v970 = vpop.trf.xlu0
    %v971 = vpop.trf.xlu0
    %v972 = vpop.trf.xlu0
    %v973 = vpop.trf.xlu0
    %v974 = vpop.trf.xlu0
    %v975 = vpop.trf.xlu0
    %v976 = vpop.trf.xlu0
    %v977 = vpop.trf.xlu0
    %v978 = vpop.trf.xlu0
    %v979 = vpop.trf.xlu0
    %v980 = vpop.trf.xlu0
    %981 = vst.msk [vmem:[#allocation3] sm:$0xff] %vm292, %v965
    %982 = vxpose.xlu0.b32.start [1/16] %v616, 128
    %983 = vxpose.xlu0.b32.cont [2/16] 0.0, 128
    %984 = vxpose.xlu0.b32.cont [3/16] 0.0, 128
    %985 = vxpose.xlu0.b32.cont [4/16] 0.0, 128
    %986 = vxpose.xlu0.b32.cont [5/16] 0.0, 128
    %987 = vxpose.xlu0.b32.cont [6/16] 0.0, 128
    %988 = vxpose.xlu0.b32.cont [7/16] 0.0, 128
    %989 = vxpose.xlu0.b32.cont [8/16] 0.0, 128
    %990 = vxpose.xlu0.b32.cont [9/16] 0.0, 128
    %991 = vxpose.xlu0.b32.cont [10/16] 0.0, 128
    %992 = vxpose.xlu0.b32.cont [11/16] 0.0, 128
    %993 = vxpose.xlu0.b32.cont [12/16] 0.0, 128
    %994 = vxpose.xlu0.b32.cont [13/16] 0.0, 128
    %995 = vxpose.xlu0.b32.cont [14/16] 0.0, 128
    %996 = vxpose.xlu0.b32.cont [15/16] 0.0, 128
    %997 = vxpose.xlu0.b32.end [16/16] 0.0, 128
    %v998 = vpop.trf.xlu0
    %v999 = vpop.trf.xlu0
    %v1000 = vpop.trf.xlu0
    %v1001 = vpop.trf.xlu0
    %v1002 = vpop.trf.xlu0
    %v1003 = vpop.trf.xlu0
    %v1004 = vpop.trf.xlu0
    %v1005 = vpop.trf.xlu0
    %v1006 = vpop.trf.xlu0
    %v1007 = vpop.trf.xlu0
    %v1008 = vpop.trf.xlu0
    %v1009 = vpop.trf.xlu0
    %v1010 = vpop.trf.xlu0
    %v1011 = vpop.trf.xlu0
    %v1012 = vpop.trf.xlu0
    %v1013 = vpop.trf.xlu0
    %1014 = vst.msk [vmem:[#allocation3 + $0x8] sm:$0xff] %vm292, %v998
    %1015 = vxpose.xlu0.b32.start [1/16] %v781, 128
    %1016 = vxpose.xlu0.b32.cont [2/16] 0.0, 128
    %1017 = vxpose.xlu0.b32.cont [3/16] 0.0, 128
    %1018 = vxpose.xlu0.b32.cont [4/16] 0.0, 128
    %1019 = vxpose.xlu0.b32.cont [5/16] 0.0, 128
    %1020 = vxpose.xlu0.b32.cont [6/16] 0.0, 128
    %1021 = vxpose.xlu0.b32.cont [7/16] 0.0, 128
    %1022 = vxpose.xlu0.b32.cont [8/16] 0.0, 128
    %1023 = vxpose.xlu0.b32.cont [9/16] 0.0, 128
    %1024 = vxpose.xlu0.b32.cont [10/16] 0.0, 128
    %1025 = vxpose.xlu0.b32.cont [11/16] 0.0, 128
    %1026 = vxpose.xlu0.b32.cont [12/16] 0.0, 128
    %1027 = vxpose.xlu0.b32.cont [13/16] 0.0, 128
    %1028 = vxpose.xlu0.b32.cont [14/16] 0.0, 128
    %1029 = vxpose.xlu0.b32.cont [15/16] 0.0, 128
    %1030 = vxpose.xlu0.b32.end [16/16] 0.0, 128
    %v1031 = vpop.trf.xlu0
    %v1032 = vpop.trf.xlu0
    %v1033 = vpop.trf.xlu0
    %v1034 = vpop.trf.xlu0
    %v1035 = vpop.trf.xlu0
    %v1036 = vpop.trf.xlu0
    %v1037 = vpop.trf.xlu0
    %v1038 = vpop.trf.xlu0
    %v1039 = vpop.trf.xlu0
    %v1040 = vpop.trf.xlu0
    %v1041 = vpop.trf.xlu0
    %v1042 = vpop.trf.xlu0
    %v1043 = vpop.trf.xlu0
    %v1044 = vpop.trf.xlu0
    %v1045 = vpop.trf.xlu0
    %v1046 = vpop.trf.xlu0
    %1047 = vst.msk [vmem:[#allocation3 + $0x10] sm:$0xff] %vm292, %v1031
    %1048 = vxpose.xlu0.b32.start [1/16] %v946, 128
    %1049 = vxpose.xlu0.b32.cont [2/16] 0.0, 128
    %1050 = vxpose.xlu0.b32.cont [3/16] 0.0, 128
    %1051 = vxpose.xlu0.b32.cont [4/16] 0.0, 128
    %1052 = vxpose.xlu0.b32.cont [5/16] 0.0, 128
    %1053 = vxpose.xlu0.b32.cont [6/16] 0.0, 128
    %1054 = vxpose.xlu0.b32.cont [7/16] 0.0, 128
    %1055 = vxpose.xlu0.b32.cont [8/16] 0.0, 128
    %1056 = vxpose.xlu0.b32.cont [9/16] 0.0, 128
    %1057 = vxpose.xlu0.b32.cont [10/16] 0.0, 128
    %1058 = vxpose.xlu0.b32.cont [11/16] 0.0, 128
    %1059 = vxpose.xlu0.b32.cont [12/16] 0.0, 128
    %1060 = vxpose.xlu0.b32.cont [13/16] 0.0, 128
    %1061 = vxpose.xlu0.b32.cont [14/16] 0.0, 128
    %1062 = vxpose.xlu0.b32.cont [15/16] 0.0, 128
    %1063 = vxpose.xlu0.b32.end [16/16] 0.0, 128
    %v1064 = vpop.trf.xlu0
    %v1065 = vpop.trf.xlu0
    %v1066 = vpop.trf.xlu0
    %v1067 = vpop.trf.xlu0
    %v1068 = vpop.trf.xlu0
    %v1069 = vpop.trf.xlu0
    %v1070 = vpop.trf.xlu0
    %v1071 = vpop.trf.xlu0
    %v1072 = vpop.trf.xlu0
    %v1073 = vpop.trf.xlu0
    %v1074 = vpop.trf.xlu0
    %v1075 = vpop.trf.xlu0
    %v1076 = vpop.trf.xlu0
    %v1077 = vpop.trf.xlu0
    %v1078 = vpop.trf.xlu0
    %v1079 = vpop.trf.xlu0
    %1080 = vst.msk [vmem:[#allocation3 + $0x18] sm:$0xff] %vm292, %v1064
    %v1081 = vld [vmem:[#allocation3] ss:$4 sm:$0xff]
    %v1082 = vld [vmem:[#allocation9] sm:$0xff]
    %s1083 = scalar_lea.vmem [#allocation3], 1
    %v1084 = vld [vmem:[%s1083] ss:$4 sm:$0xff]
    %v1085 = vld [vmem:[#allocation9 + $0x8] sm:$0xff]
    %v1087 = vsel %vm292, %v1084, 0
    %1089 = vmatprep.subr.mxu0 0.0
    %1090 = vmatpush1.msra.mxu0 %v1085
    %1091 = vmatprep.subr.mxu0 0.0
    %1092 = vmatpush1.msra.mxu0 0.0
    %1093 = vmatprep.subr.mxu0 0.0
    %1094 = vmatpush1.msra.mxu0 0.0
    %1095 = vmatprep.subr.mxu0 0.0
    %1096 = vmatpush1.msra.mxu0 0.0
    %1097 = vmatprep.subr.mxu0 0.0
    %1098 = vmatpush1.msra.mxu0 0.0
    %1099 = vmatprep.subr.mxu0 0.0
    %1100 = vmatpush1.msra.mxu0 0.0
    %1101 = vmatprep.subr.mxu0 0.0
    %1102 = vmatpush1.msra.mxu0 0.0
    %1103 = vmatprep.subr.mxu0 0.0
    %1104 = vmatpush1.msra.mxu0 0.0
    %1105 = vmatprep.subr.mxu0 0.0
    %1106 = vmatpush1.msra.mxu0 0.0
    %1107 = vmatprep.subr.mxu0 0.0
    %1108 = vmatpush1.msra.mxu0 0.0
    %1109 = vmatprep.subr.mxu0 0.0
    %1110 = vmatpush1.msra.mxu0 0.0
    %1111 = vmatprep.subr.mxu0 0.0
    %1112 = vmatpush1.msra.mxu0 0.0
    %1113 = vmatprep.subr.mxu0 0.0
    %1114 = vmatpush1.msra.mxu0 0.0
    %1115 = vmatprep.subr.mxu0 0.0
    %1116 = vmatpush1.msra.mxu0 0.0
    %1117 = vmatprep.subr.mxu0 0.0
    %1118 = vmatpush1.msra.mxu0 0.0
    %1119 = vmatprep.subr.mxu0 0.0
    %1120 = vmatpush1.msra.mxu0 0.0
    %1121 = vmatprep.subr.mxu0 0.0
    %1122 = vmatpush1.msra.mxu0 0.0
    %1123 = vmatprep.subr.mxu0 0.0
    %1124 = vmatpush1.msra.mxu0 0.0
    %1125 = vmatprep.subr.mxu0 0.0
    %1126 = vmatpush1.msra.mxu0 0.0
    %1127 = vmatprep.subr.mxu0 0.0
    %1128 = vmatpush1.msra.mxu0 0.0
    %1129 = vmatprep.subr.mxu0 0.0
    %1130 = vmatpush1.msra.mxu0 0.0
    %1131 = vmatprep.subr.mxu0 0.0
    %1132 = vmatpush1.msra.mxu0 0.0
    %1133 = vmatprep.subr.mxu0 0.0
    %1134 = vmatpush1.msra.mxu0 0.0
    %1135 = vmatprep.subr.mxu0 0.0
    %1136 = vmatpush1.msra.mxu0 0.0
    %1137 = vmatprep.subr.mxu0 0.0
    %1138 = vmatpush1.msra.mxu0 0.0
    %1139 = vmatprep.subr.mxu0 0.0
    %1140 = vmatpush1.msra.mxu0 0.0
    %1141 = vmatprep.subr.mxu0 0.0
    %1142 = vmatpush1.msra.mxu0 0.0
    %1143 = vmatprep.subr.mxu0 0.0
    %1144 = vmatpush1.msra.mxu0 0.0
    %1145 = vmatprep.subr.mxu0 0.0
    %1146 = vmatpush1.msra.mxu0 0.0
    %1147 = vmatprep.subr.mxu0 0.0
    %1148 = vmatpush1.msra.mxu0 0.0
    %1149 = vmatprep.subr.mxu0 0.0
    %1150 = vmatpush1.msra.mxu0 0.0
    %1151 = vmatprep.subr.mxu0 0.0
    %1152 = vmatpush1.msra.mxu0 0.0
    %1153 = vmatprep.mubr.f32.mxu0 0.0
    %1154 = vmatmul.mubr.f32.gmra.mrb[0].mxu0 %v1087
    %v1155 = vpop.f32.mrb[0].mxu0
    %v1156 = vadd.f32 0.0, %v1155
    %v1157 = vpop.f32.mrb[0].mxu0
    %1158 = vdwg.mxu0
    %v1160 = vsel %vm292, %v1081, 0
    %1162 = vmatprep.subr.mxu0 0.0
    %1163 = vmatpush1.msra.mxu0 %v1082
    %1164 = vmatprep.subr.mxu0 0.0
    %1165 = vmatpush1.msra.mxu0 0.0
    %1166 = vmatprep.subr.mxu0 0.0
    %1167 = vmatpush1.msra.mxu0 0.0
    %1168 = vmatprep.subr.mxu0 0.0
    %1169 = vmatpush1.msra.mxu0 0.0
    %1170 = vmatprep.subr.mxu0 0.0
    %1171 = vmatpush1.msra.mxu0 0.0
    %1172 = vmatprep.subr.mxu0 0.0
    %1173 = vmatpush1.msra.mxu0 0.0
    %1174 = vmatprep.subr.mxu0 0.0
    %1175 = vmatpush1.msra.mxu0 0.0
    %1176 = vmatprep.subr.mxu0 0.0
    %1177 = vmatpush1.msra.mxu0 0.0
    %1178 = vmatprep.subr.mxu0 0.0
    %1179 = vmatpush1.msra.mxu0 0.0
    %1180 = vmatprep.subr.mxu0 0.0
    %1181 = vmatpush1.msra.mxu0 0.0
    %1182 = vmatprep.subr.mxu0 0.0
    %1183 = vmatpush1.msra.mxu0 0.0
    %1184 = vmatprep.subr.mxu0 0.0
    %1185 = vmatpush1.msra.mxu0 0.0
    %1186 = vmatprep.subr.mxu0 0.0
    %1187 = vmatpush1.msra.mxu0 0.0
    %1188 = vmatprep.subr.mxu0 0.0
    %1189 = vmatpush1.msra.mxu0 0.0
    %1190 = vmatprep.subr.mxu0 0.0
    %1191 = vmatpush1.msra.mxu0 0.0
    %1192 = vmatprep.subr.mxu0 0.0
    %1193 = vmatpush1.msra.mxu0 0.0
    %1194 = vmatprep.subr.mxu0 0.0
    %1195 = vmatpush1.msra.mxu0 0.0
    %1196 = vmatprep.subr.mxu0 0.0
    %1197 = vmatpush1.msra.mxu0 0.0
    %1198 = vmatprep.subr.mxu0 0.0
    %1199 = vmatpush1.msra.mxu0 0.0
    %1200 = vmatprep.subr.mxu0 0.0
    %1201 = vmatpush1.msra.mxu0 0.0
    %1202 = vmatprep.subr.mxu0 0.0
    %1203 = vmatpush1.msra.mxu0 0.0
    %1204 = vmatprep.subr.mxu0 0.0
    %1205 = vmatpush1.msra.mxu0 0.0
    %1206 = vmatprep.subr.mxu0 0.0
    %1207 = vmatpush1.msra.mxu0 0.0
    %1208 = vmatprep.subr.mxu0 0.0
    %1209 = vmatpush1.msra.mxu0 0.0
    %1210 = vmatprep.subr.mxu0 0.0
    %1211 = vmatpush1.msra.mxu0 0.0
    %1212 = vmatprep.subr.mxu0 0.0
    %1213 = vmatpush1.msra.mxu0 0.0
    %1214 = vmatprep.subr.mxu0 0.0
    %1215 = vmatpush1.msra.mxu0 0.0
    %1216 = vmatprep.subr.mxu0 0.0
    %1217 = vmatpush1.msra.mxu0 0.0
    %1218 = vmatprep.subr.mxu0 0.0
    %1219 = vmatpush1.msra.mxu0 0.0
    %1220 = vmatprep.subr.mxu0 0.0
    %1221 = vmatpush1.msra.mxu0 0.0
    %1222 = vmatprep.subr.mxu0 0.0
    %1223 = vmatpush1.msra.mxu0 0.0
    %1224 = vmatprep.subr.mxu0 0.0
    %1225 = vmatpush1.msra.mxu0 0.0
    %1226 = vmatprep.mubr.f32.mxu0 0.0
    %1227 = vmatmul.mubr.f32.gmra.mrb[0].mxu0 %v1160
    %v1228 = vpop.f32.mrb[0].mxu0
    %v1229 = vadd.f32 %v1156, %v1228
    %v1230 = vpop.f32.mrb[0].mxu0
    %1231 = vdwg.mxu0
    %s1232 = scalar_lea.vmem [#allocation3], 2
    %v1233 = vld [vmem:[%s1232] ss:$4 sm:$0xff]
    %v1234 = vld [vmem:[#allocation9 + $0x10] sm:$0xff]
    %v1236 = vsel %vm292, %v1233, 0
    %1238 = vmatprep.subr.mxu0 0.0
    %1239 = vmatpush1.msra.mxu0 %v1234
    %1240 = vmatprep.subr.mxu0 0.0
    %1241 = vmatpush1.msra.mxu0 0.0
    %1242 = vmatprep.subr.mxu0 0.0
    %1243 = vmatpush1.msra.mxu0 0.0
    %1244 = vmatprep.subr.mxu0 0.0
    %1245 = vmatpush1.msra.mxu0 0.0
    %1246 = vmatprep.subr.mxu0 0.0
    %1247 = vmatpush1.msra.mxu0 0.0
    %1248 = vmatprep.subr.mxu0 0.0
    %1249 = vmatpush1.msra.mxu0 0.0
    %1250 = vmatprep.subr.mxu0 0.0
    %1251 = vmatpush1.msra.mxu0 0.0
    %1252 = vmatprep.subr.mxu0 0.0
    %1253 = vmatpush1.msra.mxu0 0.0
    %1254 = vmatprep.subr.mxu0 0.0
    %1255 = vmatpush1.msra.mxu0 0.0
    %1256 = vmatprep.subr.mxu0 0.0
    %1257 = vmatpush1.msra.mxu0 0.0
    %1258 = vmatprep.subr.mxu0 0.0
    %1259 = vmatpush1.msra.mxu0 0.0
    %1260 = vmatprep.subr.mxu0 0.0
    %1261 = vmatpush1.msra.mxu0 0.0
    %1262 = vmatprep.subr.mxu0 0.0
    %1263 = vmatpush1.msra.mxu0 0.0
    %1264 = vmatprep.subr.mxu0 0.0
    %1265 = vmatpush1.msra.mxu0 0.0
    %1266 = vmatprep.subr.mxu0 0.0
    %1267 = vmatpush1.msra.mxu0 0.0
    %1268 = vmatprep.subr.mxu0 0.0
    %1269 = vmatpush1.msra.mxu0 0.0
    %1270 = vmatprep.subr.mxu0 0.0
    %1271 = vmatpush1.msra.mxu0 0.0
    %1272 = vmatprep.subr.mxu0 0.0
    %1273 = vmatpush1.msra.mxu0 0.0
    %1274 = vmatprep.subr.mxu0 0.0
    %1275 = vmatpush1.msra.mxu0 0.0
    %1276 = vmatprep.subr.mxu0 0.0
    %1277 = vmatpush1.msra.mxu0 0.0
    %1278 = vmatprep.subr.mxu0 0.0
    %1279 = vmatpush1.msra.mxu0 0.0
    %1280 = vmatprep.subr.mxu0 0.0
    %1281 = vmatpush1.msra.mxu0 0.0
    %1282 = vmatprep.subr.mxu0 0.0
    %1283 = vmatpush1.msra.mxu0 0.0
    %1284 = vmatprep.subr.mxu0 0.0
    %1285 = vmatpush1.msra.mxu0 0.0
    %1286 = vmatprep.subr.mxu0 0.0
    %1287 = vmatpush1.msra.mxu0 0.0
    %1288 = vmatprep.subr.mxu0 0.0
    %1289 = vmatpush1.msra.mxu0 0.0
    %1290 = vmatprep.subr.mxu0 0.0
    %1291 = vmatpush1.msra.mxu0 0.0
    %1292 = vmatprep.subr.mxu0 0.0
    %1293 = vmatpush1.msra.mxu0 0.0
    %1294 = vmatprep.subr.mxu0 0.0
    %1295 = vmatpush1.msra.mxu0 0.0
    %1296 = vmatprep.subr.mxu0 0.0
    %1297 = vmatpush1.msra.mxu0 0.0
    %1298 = vmatprep.subr.mxu0 0.0
    %1299 = vmatpush1.msra.mxu0 0.0
    %1300 = vmatprep.subr.mxu0 0.0
    %1301 = vmatpush1.msra.mxu0 0.0
    %1302 = vmatprep.mubr.f32.mxu0 0.0
    %1303 = vmatmul.mubr.f32.gmra.mrb[0].mxu0 %v1236
    %v1304 = vpop.f32.mrb[0].mxu0
    %v1305 = vadd.f32 0.0, %v1304
    %v1306 = vpop.f32.mrb[0].mxu0
    %1307 = vdwg.mxu0
    %v1308 = vadd.f32 %v1229, %v1305
    %s1309 = scalar_lea.vmem [#allocation3], 3
    %v1310 = vld [vmem:[%s1309] ss:$4 sm:$0xff]
    %v1311 = vld [vmem:[#allocation9 + $0x18] sm:$0xff]
    %v1313 = vsel %vm292, %v1310, 0
    %1315 = vmatprep.subr.mxu0 0.0
    %1316 = vmatpush1.msra.mxu0 %v1311
    %1317 = vmatprep.subr.mxu0 0.0
    %1318 = vmatpush1.msra.mxu0 0.0
    %1319 = vmatprep.subr.mxu0 0.0
    %1320 = vmatpush1.msra.mxu0 0.0
    %1321 = vmatprep.subr.mxu0 0.0
    %1322 = vmatpush1.msra.mxu0 0.0
    %1323 = vmatprep.subr.mxu0 0.0
    %1324 = vmatpush1.msra.mxu0 0.0
    %1325 = vmatprep.subr.mxu0 0.0
    %1326 = vmatpush1.msra.mxu0 0.0
    %1327 = vmatprep.subr.mxu0 0.0
    %1328 = vmatpush1.msra.mxu0 0.0
    %1329 = vmatprep.subr.mxu0 0.0
    %1330 = vmatpush1.msra.mxu0 0.0
    %1331 = vmatprep.subr.mxu0 0.0
    %1332 = vmatpush1.msra.mxu0 0.0
    %1333 = vmatprep.subr.mxu0 0.0
    %1334 = vmatpush1.msra.mxu0 0.0
    %1335 = vmatprep.subr.mxu0 0.0
    %1336 = vmatpush1.msra.mxu0 0.0
    %1337 = vmatprep.subr.mxu0 0.0
    %1338 = vmatpush1.msra.mxu0 0.0
    %1339 = vmatprep.subr.mxu0 0.0
    %1340 = vmatpush1.msra.mxu0 0.0
    %1341 = vmatprep.subr.mxu0 0.0
    %1342 = vmatpush1.msra.mxu0 0.0
    %1343 = vmatprep.subr.mxu0 0.0
    %1344 = vmatpush1.msra.mxu0 0.0
    %1345 = vmatprep.subr.mxu0 0.0
    %1346 = vmatpush1.msra.mxu0 0.0
    %1347 = vmatprep.subr.mxu0 0.0
    %1348 = vmatpush1.msra.mxu0 0.0
    %1349 = vmatprep.subr.mxu0 0.0
    %1350 = vmatpush1.msra.mxu0 0.0
    %1351 = vmatprep.subr.mxu0 0.0
    %1352 = vmatpush1.msra.mxu0 0.0
    %1353 = vmatprep.subr.mxu0 0.0
    %1354 = vmatpush1.msra.mxu0 0.0
    %1355 = vmatprep.subr.mxu0 0.0
    %1356 = vmatpush1.msra.mxu0 0.0
    %1357 = vmatprep.subr.mxu0 0.0
    %1358 = vmatpush1.msra.mxu0 0.0
    %1359 = vmatprep.subr.mxu0 0.0
    %1360 = vmatpush1.msra.mxu0 0.0
    %1361 = vmatprep.subr.mxu0 0.0
    %1362 = vmatpush1.msra.mxu0 0.0
    %1363 = vmatprep.subr.mxu0 0.0
    %1364 = vmatpush1.msra.mxu0 0.0
    %1365 = vmatprep.subr.mxu0 0.0
    %1366 = vmatpush1.msra.mxu0 0.0
    %1367 = vmatprep.subr.mxu0 0.0
    %1368 = vmatpush1.msra.mxu0 0.0
    %1369 = vmatprep.subr.mxu0 0.0
    %1370 = vmatpush1.msra.mxu0 0.0
    %1371 = vmatprep.subr.mxu0 0.0
    %1372 = vmatpush1.msra.mxu0 0.0
    %1373 = vmatprep.subr.mxu0 0.0
    %1374 = vmatpush1.msra.mxu0 0.0
    %1375 = vmatprep.subr.mxu0 0.0
    %1376 = vmatpush1.msra.mxu0 0.0
    %1377 = vmatprep.subr.mxu0 0.0
    %1378 = vmatpush1.msra.mxu0 0.0
    %1379 = vmatprep.mubr.f32.mxu0 0.0
    %1380 = vmatmul.mubr.f32.gmra.mrb[0].mxu0 %v1313
    %v1381 = vpop.f32.mrb[0].mxu0
    %v1382 = vadd.f32 0.0, %v1381
    %v1383 = vpop.f32.mrb[0].mxu0
    %1384 = vdwg.mxu0
    %v1385 = vadd.f32 %v1308, %v1382
    %1386 = vst.msk [vmem:[#allocation10] sm:$0xff] %vm59, %v1385
    // Predicated region
    $region26: #{tpu_custom_call.1} parent=1 // pred_check
      _
    $region27: #{tpu_custom_call.1} parent=1 // pred_check_branch
      %1388 = sbr.rel (0) target = $region29
    $region28: #{tpu_custom_call.1} parent=1 // pred_region
      %s1390 = ssub.s32 128, 128
      %1391 = vsyncadd [#allocation6], %s1390
      %s1393 = sshll.u32 [#allocation10], 4
      %s1394 = int_to_ptr.vmem [resolvable:$true] %s1393
      %1396 = dma.vmem_to_hbm [thread:$0]  %s1394, 128, %s3, [#allocation6]
    $region29: #{tpu_custom_call.1} parent=1 // pred_fallthru
      _
    // Predicated region
    $region30: #{tpu_custom_call.1} parent=1 // pred_check
      _
    $region31: #{tpu_custom_call.1} parent=1 // pred_check_branch
      %1398 = sbr.rel (0) target = $region33
    $region32: #{tpu_custom_call.1} parent=1 // pred_region
      %1399 = dma.done [#allocation6], 128
    $region33: #{tpu_custom_call.1} parent=1 // pred_fallthru
      _
    %1400 = vsyncpa [#allocation5], 1
    %1401 = vsyncpa [#allocation8], 1
    %1402 = vsyncpa [#allocation6], 1

</llo_original>
